<compile_context>
chip_gen: v5e
topology: v5e:2x2
jax: 0.10.0
libtpu: 0.0.40
codegen_flags: <defaults>
</compile_context>

<pallas_src>
import jax
import jax.numpy as jnp
from jax import lax
from jax.experimental import pallas as pl
from jax.experimental.pallas import tpu as pltpu

# small, module-consistent shapes
B, T, D_IN, H = 2, 8, 16, 32
G = 4 * H          # 128 gate lanes per direction
GF = 2 * G         # 256 fused gate lanes (fwd + bwd interleaved per gate)

# ---------------------------------------------------------------------------
# packed parameter slab layouts
# ---------------------------------------------------------------------------
# W slab: (R_W, 256) bfloat16, right-multiply (in_dim, out_dim) weights stacked
# along rows at 16-row aligned offsets (bf16 sublane packing friendly).
W_ROWS = dict(
    emb=0,         # (D_IN, H)
    f0w1=16, f0w2=48, f1w1=80, f1w2=112,   # FFN (H, H)
    c_w1=144,      # classifier (2H, H)
    l0f_wi=208,    # (H, GF) layer-0 fwd input->gates, fused cols (bwd cols 0)
    l0b_wi=240,    # (H, GF) layer-0 bwd input->gates, fused cols (fwd cols 0)
    l0_whh=272,    # (2H, GF) block-diagonal fused recurrent weight
    l1f_wi=336,    # (2H, G) layer-1 fwd input->gates
    l1b_wi=400,    # (2H, G) layer-1 bwd input->gates
    l1f_whh=464,   # (H, G)  layer-1 fwd recurrent weight
)
R_W = 496

# V slab: (R_V, 256) float32. One vector per row (biases, LN gamma/beta,
# pre-summed LSTM b_ih+b_hh, final (H,1) classifier weight as a row).
V_ROWS = dict(
    emb_b=0, lne_g=1, lne_b=2,
    f0b1=3, f0b2=4, f0g=5, f0bb=6,
    f1b1=7, f1b2=8, f1g=9, f1bb=10,
    c_ln1g=11, c_ln1b=12, c_b1=13, c_ln2g=14, c_ln2b=15, c_b2=16,
    l0_b=17,       # fused (1, GF) layer-0 bias, both dirs, b_ih+b_hh pre-summed
    l1f_b=18, l1b_b=19,
    c_w2=20,
)
R_V = 24


def sepsis_kernel(x_ref, w_ref, v_ref, out_ref, seq_ref):
    f32, bf16 = jnp.float32, jnp.bfloat16

    def w(name, rows, cols):
        r = W_ROWS[name]
        return w_ref[r:r + rows, 0:cols]          # bf16, static aligned slice

    def v(name, cols):
        r = V_ROWS[name]
        return v_ref[r:r + 1, 0:cols]             # f32 (1, cols)

    def ln(val, gname, bname, eps):
        d = val.shape[-1]
        mu = jnp.mean(val, axis=-1, keepdims=True)
        var = jnp.mean((val - mu) ** 2, axis=-1, keepdims=True)
        return (val - mu) * lax.rsqrt(var + eps) * v(gname, d) + v(bname, d)

    def mm(a, wmat):                              # bf16 MXU operands, f32 acc
        return jnp.dot(a.astype(bf16), wmat, preferred_element_type=f32)

    # ---------- token-parallel trunk: embedding -> LN -> 2x (FFN + LN) ----------
    # x arrives TIME-MAJOR (T*B, D_IN); token order is irrelevant for the trunk
    # but lets every recurrence slice contiguous rows later (no rows_t gathers).
    x = x_ref[...]
    h = mm(x, w("emb", D_IN, H)) + v("emb_b", H)
    h = ln(h, "lne_g", "lne_b", 1e-12)

    def ffn(val, w1, b1, w2, b2):
        # gelu_activation=False -> ReLU; dropout identity (eval mode)
        u = jnp.maximum(mm(val, w(w1, H, H)) + v(b1, H), 0.0)
        return mm(u, w(w2, H, H)) + v(b2, H)

    h = ln(h + ffn(h, "f0w1", "f0b1", "f0w2", "f0b2"), "f0g", "f0bb", 1e-12)
    h = ln(h + ffn(h, "f1w1", "f1b1", "f1w2", "f1b2"), "f1g", "f1bb", 1e-12)

    h_bf = h.astype(bf16)

    # ---------- hoisted input->gate matmuls for fused LSTM layer 0 --------------
    # Fused 256-lane gate layout: [i_f,i_b | f_f,f_b | g_f,g_b | o_f,o_b], 32
    # lanes each. Fwd weights live only in fwd columns, bwd only in bwd columns.
    gx_f = (jnp.dot(h_bf, w("l0f_wi", H, GF), preferred_element_type=f32)
            + v("l0_b", GF))                      # fused bias folded in once
    gx_b = jnp.dot(h_bf, w("l0b_wi", H, GF), preferred_element_type=f32)

    def fused_cell(gates, c_prev):
        # full-vreg nonlinearities over the 256 fused lanes: 2 EUP ops per step
        sig = jax.nn.sigmoid(gates)
        th = jnp.tanh(gates)
        i = sig[:, 0:2 * H]
        f = sig[:, 2 * H:4 * H]
        g = th[:, 4 * H:6 * H]
        o = sig[:, 6 * H:8 * H]
        c_new = f * c_prev + i * g                # (B, 2H) fused [c_f | c_b]
        h_new = o * jnp.tanh(c_new)               # (B, 2H) fused [h_f | h_b]
        return h_new, c_new

    # ---------- LSTM layer 0: fwd & bwd fused per step, fully unrolled (T=8) ----
    w_hh0 = w("l0_whh", 2 * H, GF)                # (64, 256) block-diagonal
    hc = jnp.zeros((B, 2 * H), f32)
    cc = jnp.zeros((B, 2 * H), f32)
    for s in range(T):
        tf_, tb_ = s, T - 1 - s
        g_in = (gx_f[tf_ * B:(tf_ + 1) * B, :]
                + gx_b[tb_ * B:(tb_ + 1) * B, :]
                + jnp.dot(hc.astype(bf16), w_hh0, preferred_element_type=f32))
        hc, cc = fused_cell(g_in, cc)
        # time-aligned scatter of the two direction halves into VMEM scratch
        seq_ref[tf_ * B:(tf_ + 1) * B, 0:H] = hc[:, 0:H]
        seq_ref[tb_ * B:(tb_ + 1) * B, H:2 * H] = hc[:, H:2 * H]

    # ---------- LSTM layer 1 ------------------------------------------------------
    seq_bf = seq_ref[...].astype(bf16)            # (T*B, 2H) time-major [h_f|h_b]

    def cell(gates, c_prev):                      # standard [i,f,g,o] 128-lane cell
        sig = jax.nn.sigmoid(gates)
        th = jnp.tanh(gates)
        i, f, o = sig[:, 0:H], sig[:, H:2 * H], sig[:, 3 * H:4 * H]
        g = th[:, 2 * H:3 * H]
        c_new = f * c_prev + i * g
        return o * jnp.tanh(c_new), c_new

    zeros_h = jnp.zeros((B, H), f32)

    # backward direction hoisted BEFORE the fwd recurrence: lstm_out[:, -1] for
    # the reverse direction is the hidden after its FIRST step (time T-1, zero
    # initial state), so the hprev @ W_hh term vanishes.
    g1b = (jnp.dot(seq_bf[(T - 1) * B:T * B, :], w("l1b_wi", 2 * H, G),
                   preferred_element_type=f32) + v("l1b_b", G))
    h1b, _ = cell(g1b, zeros_h)

    # single fused (2H -> 4H) hoisted input->gate matmul for the fwd direction
    gx1f = (jnp.dot(seq_bf, w("l1f_wi", 2 * H, G), preferred_element_type=f32)
            + v("l1f_b", G))

    w_hh1 = w("l1f_whh", H, G)
    h1, c1 = zeros_h, zeros_h
    for t in range(T):
        g1 = (gx1f[t * B:(t + 1) * B, :]
              + jnp.dot(h1.astype(bf16), w_hh1, preferred_element_type=f32))
        h1, c1 = cell(g1, c1)

    # ---------- classifier head ---------------------------------------------------
    z = jnp.concatenate([h1, h1b], axis=-1)       # (B, 2H) == lstm_out[:, -1]
    z = ln(z, "c_ln1g", "c_ln1b", 1e-5)           # nn.LayerNorm default eps
    z = jnp.maximum(z, 0.0)
    z = mm(z, w("c_w1", 2 * H, H)) + v("c_b1", H)
    z = ln(z, "c_ln2g", "c_ln2b", 1e-5)
    z = jnp.maximum(z, 0.0)
    # final Linear(H, 1) as elementwise-mul + lane reduction (avoids N=1 matmul)
    out_ref[...] = (jnp.sum(z * v("c_w2", H), axis=-1, keepdims=True)
                    + v("c_b2", 1))


# ---------------------------------------------------------------------------
# parameter construction (deterministic synthetic weights, packed into slabs)
# ---------------------------------------------------------------------------
def init_params():
    keys = jax.random.split(jax.random.PRNGKey(42), 64)
    ki = [0]

    def nxt():
        k = keys[ki[0]]
        ki[0] += 1
        return k

    def nrm(shape, scale=0.1):
        return jax.random.normal(nxt(), shape, jnp.float32) * scale

    def fuse_cols(mat_f, mat_b):
        # (rows, 4H) fwd + (rows, 4H) bwd in [i,f,g,o] order -> (rows, 8H) fused
        out = jnp.zeros((mat_f.shape[0], GF), jnp.float32)
        for gi in range(4):
            out = out.at[:, 2 * H * gi:2 * H * gi + H].set(mat_f[:, H * gi:H * (gi + 1)])
            out = out.at[:, 2 * H * gi + H:2 * H * (gi + 1)].set(mat_b[:, H * gi:H * (gi + 1)])
        return out

    zG = jnp.zeros((H, G), jnp.float32)

    # ---- W slab (f32 built, stored bf16) ----
    w = jnp.zeros((R_W, GF), jnp.float32)

    def put_w(name, rows, cols, val=None):
        nonlocal w
        r = W_ROWS[name]
        if val is None:
            val = nrm((rows, cols))
        w = w.at[r:r + rows, 0:cols].set(val)

    put_w("emb", D_IN, H)
    for name in ["f0w1", "f0w2", "f1w1", "f1w2"]:
        put_w(name, H, H)
    put_w("c_w1", 2 * H, H)

    # layer-0 LSTM (fused gate-column layout)
    put_w("l0f_wi", H, GF, fuse_cols(nrm((H, G)), zG))
    put_w("l0b_wi", H, GF, fuse_cols(zG, nrm((H, G))))
    whh_fused = jnp.concatenate(
        [fuse_cols(nrm((H, G)), zG), fuse_cols(zG, nrm((H, G)))], axis=0)
    put_w("l0_whh", 2 * H, GF, whh_fused)         # block-diagonal (2H, 2G)

    # layer-1 LSTM
    put_w("l1f_wi", 2 * H, G)
    put_w("l1b_wi", 2 * H, G)
    put_w("l1f_whh", H, G)

    # ---- V slab (f32) ----
    vv = jnp.zeros((R_V, GF), jnp.float32)

    def put_v(name, cols, kind="rand", val=None):
        nonlocal vv
        r = V_ROWS[name]
        if val is not None:
            vec = val
        elif kind == "rand":
            vec = nrm((1, cols))
        elif kind == "ones":
            vec = jnp.ones((1, cols), jnp.float32)
        else:
            vec = jnp.zeros((1, cols), jnp.float32)
        vv = vv.at[r:r + 1, 0:cols].set(vec)

    put_v("emb_b", H); put_v("lne_g", H, "ones"); put_v("lne_b", H, "zeros")
    for pfx in ["f0", "f1"]:
        put_v(pfx + "b1", H); put_v(pfx + "b2", H)
        put_v(pfx + "g", H, "ones"); put_v(pfx + "bb", H, "zeros")
    put_v("c_ln1g", 2 * H, "ones"); put_v("c_ln1b", 2 * H, "zeros")
    put_v("c_b1", H)
    put_v("c_ln2g", H, "ones"); put_v("c_ln2b", H, "zeros")
    put_v("c_b2", 1)
    # LSTM biases: torch's b_ih + b_hh pre-summed; layer-0 stored in fused layout
    put_v("l0_b", GF, val=fuse_cols(nrm((1, G)), nrm((1, G))))
    put_v("l1f_b", G); put_v("l1b_b", G)
    put_v("c_w2", H)   # final Linear(H, 1) weight stored as a row vector

    return w.astype(jnp.bfloat16), vv


def sepsis_pred(x_btd, w_slab, v_slab):
    """x_btd: (B, T, D_IN) float32, like the PyTorch batch_first input."""
    # One tiny wrapper-side reorder to time-major so every in-kernel recurrence
    # step reads contiguous rows (replaces the per-step rows_t sublane gathers).
    x_tm = jnp.transpose(x_btd.astype(jnp.float32), (1, 0, 2)).reshape(T * B, D_IN)
    return pl.pallas_call(
        sepsis_kernel,
        out_shape=jax.ShapeDtypeStruct((B, 1), jnp.float32),
        in_specs=[pl.BlockSpec(memory_space=pltpu.MemorySpace.VMEM)] * 3,
        out_specs=pl.BlockSpec(memory_space=pltpu.MemorySpace.VMEM),
        scratch_shapes=[pltpu.VMEM((T * B, 2 * H), jnp.float32)],
    )(x_tm, w_slab, v_slab)


if __name__ == "__main__":
    w_slab, v_slab = init_params()
    x = jax.random.normal(jax.random.PRNGKey(0), (B, T, D_IN), jnp.float32)
    out = jax.jit(sepsis_pred)(x, w_slab, v_slab)
    jax.block_until_ready(out)
    assert out.shape == (B, 1) and out.dtype == jnp.float32
    # TODO(synk): dropout layers (p=0.5) are identity here (eval/inference mode).
    print("KERNEL_OK")
</pallas_src>

<mosaic_0001>
module attributes {stable_mosaic.version = 11 : i64} {
  func.func @sepsis_kernel(%arg0: memref<16x16xf32, #tpu.memory_space<vmem>>, %arg1: memref<496x256xbf16, #tpu.memory_space<vmem>>, %arg2: memref<24x256xf32, #tpu.memory_space<vmem>>, %arg3: memref<2x1xf32, #tpu.memory_space<vmem>>, %arg4: memref<16x64xf32, #tpu.memory_space<vmem>>) attributes {dimension_semantics = [], scalar_prefetch = 0 : i64, scratch_operands = 1 : i64, tpu.core_type = #tpu.core_type<tc>} {
    %c0 = arith.constant 0 : index
    %c0_0 = arith.constant 0 : index
    %0 = vector.load %arg0[%c0, %c0_0] : memref<16x16xf32, #tpu.memory_space<vmem>>, vector<16x16xf32>
    %c0_1 = arith.constant 0 : index
    %c0_2 = arith.constant 0 : index
    %1 = vector.load %arg1[%c0_1, %c0_2] : memref<496x256xbf16, #tpu.memory_space<vmem>>, vector<16x32xbf16>
    %2 = arith.truncf %0 : vector<16x16xf32> to vector<16x16xbf16>
    %cst = arith.constant dense<0.000000e+00> : vector<16x32xf32>
    %3 = tpu.matmul %2, %1, %cst {dimension_numbers = #tpu.dot_dimension_numbers<[1], [0], [0], [1], [0, 0, 1, 1], [], []>} : vector<16x16xbf16>, vector<16x32xbf16>, vector<16x32xf32> -> vector<16x32xf32>
    %c0_3 = arith.constant 0 : index
    %c0_4 = arith.constant 0 : index
    %4 = vector.load %arg2[%c0_3, %c0_4] : memref<24x256xf32, #tpu.memory_space<vmem>>, vector<1x32xf32>
    %5 = vector.broadcast %4 : vector<1x32xf32> to vector<16x32xf32>
    %6 = arith.addf %3, %5 : vector<16x32xf32>
    %cst_5 = arith.constant dense<0.000000e+00> : vector<16xf32>
    %7 = vector.multi_reduction <add>, %6, %cst_5 [1] : vector<16x32xf32> to vector<16xf32>
    %8 = vector.shape_cast %7 : vector<16xf32> to vector<16x1xf32>
    %cst_6 = arith.constant 3.200000e+01 : f32
    %9 = vector.broadcast %cst_6 : f32 to vector<16x1xf32>
    %10 = arith.divf %8, %9 : vector<16x1xf32>
    %11 = vector.broadcast %10 : vector<16x1xf32> to vector<16x32xf32>
    %12 = arith.subf %6, %11 : vector<16x32xf32>
    %13 = arith.mulf %12, %12 : vector<16x32xf32>
    %cst_7 = arith.constant dense<0.000000e+00> : vector<16xf32>
    %14 = vector.multi_reduction <add>, %13, %cst_7 [1] : vector<16x32xf32> to vector<16xf32>
    %15 = vector.shape_cast %14 : vector<16xf32> to vector<16x1xf32>
    %cst_8 = arith.constant 3.200000e+01 : f32
    %16 = vector.broadcast %cst_8 : f32 to vector<16x1xf32>
    %17 = arith.divf %15, %16 : vector<16x1xf32>
    %18 = vector.broadcast %10 : vector<16x1xf32> to vector<16x32xf32>
    %19 = arith.subf %6, %18 : vector<16x32xf32>
    %cst_9 = arith.constant 9.99999996E-13 : f32
    %20 = vector.broadcast %cst_9 : f32 to vector<16x1xf32>
    %21 = arith.addf %17, %20 : vector<16x1xf32>
    %22 = math.rsqrt %21 : vector<16x1xf32>
    %23 = vector.broadcast %22 : vector<16x1xf32> to vector<16x32xf32>
    %24 = arith.mulf %19, %23 : vector<16x32xf32>
    %c1 = arith.constant 1 : index
    %c0_10 = arith.constant 0 : index
    %25 = vector.load %arg2[%c1, %c0_10] : memref<24x256xf32, #tpu.memory_space<vmem>>, vector<1x32xf32>
    %26 = vector.broadcast %25 : vector<1x32xf32> to vector<16x32xf32>
    %27 = arith.mulf %24, %26 : vector<16x32xf32>
    %c2 = arith.constant 2 : index
    %c0_11 = arith.constant 0 : index
    %28 = vector.load %arg2[%c2, %c0_11] : memref<24x256xf32, #tpu.memory_space<vmem>>, vector<1x32xf32>
    %29 = vector.broadcast %28 : vector<1x32xf32> to vector<16x32xf32>
    %30 = arith.addf %27, %29 : vector<16x32xf32>
    %c16 = arith.constant 16 : index
    %c0_12 = arith.constant 0 : index
    %31 = vector.load %arg1[%c16, %c0_12] : memref<496x256xbf16, #tpu.memory_space<vmem>>, vector<32x32xbf16>
    %32 = arith.truncf %30 : vector<16x32xf32> to vector<16x32xbf16>
    %cst_13 = arith.constant dense<0.000000e+00> : vector<16x32xf32>
    %33 = tpu.matmul %32, %31, %cst_13 {dimension_numbers = #tpu.dot_dimension_numbers<[1], [0], [0], [1], [0, 0, 1, 1], [], []>} : vector<16x32xbf16>, vector<32x32xbf16>, vector<16x32xf32> -> vector<16x32xf32>
    %c3 = arith.constant 3 : index
    %c0_14 = arith.constant 0 : index
    %34 = vector.load %arg2[%c3, %c0_14] : memref<24x256xf32, #tpu.memory_space<vmem>>, vector<1x32xf32>
    %35 = vector.broadcast %34 : vector<1x32xf32> to vector<16x32xf32>
    %36 = arith.addf %33, %35 : vector<16x32xf32>
    %cst_15 = arith.constant 0.000000e+00 : f32
    %37 = vector.broadcast %cst_15 : f32 to vector<16x32xf32>
    %38 = arith.maximumf %36, %37 : vector<16x32xf32>
    %c48 = arith.constant 48 : index
    %c0_16 = arith.constant 0 : index
    %39 = vector.load %arg1[%c48, %c0_16] : memref<496x256xbf16, #tpu.memory_space<vmem>>, vector<32x32xbf16>
    %40 = arith.truncf %38 : vector<16x32xf32> to vector<16x32xbf16>
    %cst_17 = arith.constant dense<0.000000e+00> : vector<16x32xf32>
    %41 = tpu.matmul %40, %39, %cst_17 {dimension_numbers = #tpu.dot_dimension_numbers<[1], [0], [0], [1], [0, 0, 1, 1], [], []>} : vector<16x32xbf16>, vector<32x32xbf16>, vector<16x32xf32> -> vector<16x32xf32>
    %c4 = arith.constant 4 : index
    %c0_18 = arith.constant 0 : index
    %42 = vector.load %arg2[%c4, %c0_18] : memref<24x256xf32, #tpu.memory_space<vmem>>, vector<1x32xf32>
    %43 = vector.broadcast %42 : vector<1x32xf32> to vector<16x32xf32>
    %44 = arith.addf %41, %43 : vector<16x32xf32>
    %45 = arith.addf %30, %44 : vector<16x32xf32>
    %cst_19 = arith.constant dense<0.000000e+00> : vector<16xf32>
    %46 = vector.multi_reduction <add>, %45, %cst_19 [1] : vector<16x32xf32> to vector<16xf32>
    %47 = vector.shape_cast %46 : vector<16xf32> to vector<16x1xf32>
    %cst_20 = arith.constant 3.200000e+01 : f32
    %48 = vector.broadcast %cst_20 : f32 to vector<16x1xf32>
    %49 = arith.divf %47, %48 : vector<16x1xf32>
    %50 = vector.broadcast %49 : vector<16x1xf32> to vector<16x32xf32>
    %51 = arith.subf %45, %50 : vector<16x32xf32>
    %52 = arith.mulf %51, %51 : vector<16x32xf32>
    %cst_21 = arith.constant dense<0.000000e+00> : vector<16xf32>
    %53 = vector.multi_reduction <add>, %52, %cst_21 [1] : vector<16x32xf32> to vector<16xf32>
    %54 = vector.shape_cast %53 : vector<16xf32> to vector<16x1xf32>
    %cst_22 = arith.constant 3.200000e+01 : f32
    %55 = vector.broadcast %cst_22 : f32 to vector<16x1xf32>
    %56 = arith.divf %54, %55 : vector<16x1xf32>
    %57 = vector.broadcast %49 : vector<16x1xf32> to vector<16x32xf32>
    %58 = arith.subf %45, %57 : vector<16x32xf32>
    %cst_23 = arith.constant 9.99999996E-13 : f32
    %59 = vector.broadcast %cst_23 : f32 to vector<16x1xf32>
    %60 = arith.addf %56, %59 : vector<16x1xf32>
    %61 = math.rsqrt %60 : vector<16x1xf32>
    %62 = vector.broadcast %61 : vector<16x1xf32> to vector<16x32xf32>
    %63 = arith.mulf %58, %62 : vector<16x32xf32>
    %c5 = arith.constant 5 : index
    %c0_24 = arith.constant 0 : index
    %64 = vector.load %arg2[%c5, %c0_24] : memref<24x256xf32, #tpu.memory_space<vmem>>, vector<1x32xf32>
    %65 = vector.broadcast %64 : vector<1x32xf32> to vector<16x32xf32>
    %66 = arith.mulf %63, %65 : vector<16x32xf32>
    %c6 = arith.constant 6 : index
    %c0_25 = arith.constant 0 : index
    %67 = vector.load %arg2[%c6, %c0_25] : memref<24x256xf32, #tpu.memory_space<vmem>>, vector<1x32xf32>
    %68 = vector.broadcast %67 : vector<1x32xf32> to vector<16x32xf32>
    %69 = arith.addf %66, %68 : vector<16x32xf32>
    %c80 = arith.constant 80 : index
    %c0_26 = arith.constant 0 : index
    %70 = vector.load %arg1[%c80, %c0_26] : memref<496x256xbf16, #tpu.memory_space<vmem>>, vector<32x32xbf16>
    %71 = arith.truncf %69 : vector<16x32xf32> to vector<16x32xbf16>
    %cst_27 = arith.constant dense<0.000000e+00> : vector<16x32xf32>
    %72 = tpu.matmul %71, %70, %cst_27 {dimension_numbers = #tpu.dot_dimension_numbers<[1], [0], [0], [1], [0, 0, 1, 1], [], []>} : vector<16x32xbf16>, vector<32x32xbf16>, vector<16x32xf32> -> vector<16x32xf32>
    %c7 = arith.constant 7 : index
    %c0_28 = arith.constant 0 : index
    %73 = vector.load %arg2[%c7, %c0_28] : memref<24x256xf32, #tpu.memory_space<vmem>>, vector<1x32xf32>
    %74 = vector.broadcast %73 : vector<1x32xf32> to vector<16x32xf32>
    %75 = arith.addf %72, %74 : vector<16x32xf32>
    %cst_29 = arith.constant 0.000000e+00 : f32
    %76 = vector.broadcast %cst_29 : f32 to vector<16x32xf32>
    %77 = arith.maximumf %75, %76 : vector<16x32xf32>
    %c112 = arith.constant 112 : index
    %c0_30 = arith.constant 0 : index
    %78 = vector.load %arg1[%c112, %c0_30] : memref<496x256xbf16, #tpu.memory_space<vmem>>, vector<32x32xbf16>
    %79 = arith.truncf %77 : vector<16x32xf32> to vector<16x32xbf16>
    %cst_31 = arith.constant dense<0.000000e+00> : vector<16x32xf32>
    %80 = tpu.matmul %79, %78, %cst_31 {dimension_numbers = #tpu.dot_dimension_numbers<[1], [0], [0], [1], [0, 0, 1, 1], [], []>} : vector<16x32xbf16>, vector<32x32xbf16>, vector<16x32xf32> -> vector<16x32xf32>
    %c8 = arith.constant 8 : index
    %c0_32 = arith.constant 0 : index
    %81 = vector.load %arg2[%c8, %c0_32] : memref<24x256xf32, #tpu.memory_space<vmem>>, vector<1x32xf32>
    %82 = vector.broadcast %81 : vector<1x32xf32> to vector<16x32xf32>
    %83 = arith.addf %80, %82 : vector<16x32xf32>
    %84 = arith.addf %69, %83 : vector<16x32xf32>
    %cst_33 = arith.constant dense<0.000000e+00> : vector<16xf32>
    %85 = vector.multi_reduction <add>, %84, %cst_33 [1] : vector<16x32xf32> to vector<16xf32>
    %86 = vector.shape_cast %85 : vector<16xf32> to vector<16x1xf32>
    %cst_34 = arith.constant 3.200000e+01 : f32
    %87 = vector.broadcast %cst_34 : f32 to vector<16x1xf32>
    %88 = arith.divf %86, %87 : vector<16x1xf32>
    %89 = vector.broadcast %88 : vector<16x1xf32> to vector<16x32xf32>
    %90 = arith.subf %84, %89 : vector<16x32xf32>
    %91 = arith.mulf %90, %90 : vector<16x32xf32>
    %cst_35 = arith.constant dense<0.000000e+00> : vector<16xf32>
    %92 = vector.multi_reduction <add>, %91, %cst_35 [1] : vector<16x32xf32> to vector<16xf32>
    %93 = vector.shape_cast %92 : vector<16xf32> to vector<16x1xf32>
    %cst_36 = arith.constant 3.200000e+01 : f32
    %94 = vector.broadcast %cst_36 : f32 to vector<16x1xf32>
    %95 = arith.divf %93, %94 : vector<16x1xf32>
    %96 = vector.broadcast %88 : vector<16x1xf32> to vector<16x32xf32>
    %97 = arith.subf %84, %96 : vector<16x32xf32>
    %cst_37 = arith.constant 9.99999996E-13 : f32
    %98 = vector.broadcast %cst_37 : f32 to vector<16x1xf32>
    %99 = arith.addf %95, %98 : vector<16x1xf32>
    %100 = math.rsqrt %99 : vector<16x1xf32>
    %101 = vector.broadcast %100 : vector<16x1xf32> to vector<16x32xf32>
    %102 = arith.mulf %97, %101 : vector<16x32xf32>
    %c9 = arith.constant 9 : index
    %c0_38 = arith.constant 0 : index
    %103 = vector.load %arg2[%c9, %c0_38] : memref<24x256xf32, #tpu.memory_space<vmem>>, vector<1x32xf32>
    %104 = vector.broadcast %103 : vector<1x32xf32> to vector<16x32xf32>
    %105 = arith.mulf %102, %104 : vector<16x32xf32>
    %c10 = arith.constant 10 : index
    %c0_39 = arith.constant 0 : index
    %106 = vector.load %arg2[%c10, %c0_39] : memref<24x256xf32, #tpu.memory_space<vmem>>, vector<1x32xf32>
    %107 = vector.broadcast %106 : vector<1x32xf32> to vector<16x32xf32>
    %108 = arith.addf %105, %107 : vector<16x32xf32>
    %109 = arith.truncf %108 : vector<16x32xf32> to vector<16x32xbf16>
    %c208 = arith.constant 208 : index
    %c0_40 = arith.constant 0 : index
    %110 = vector.load %arg1[%c208, %c0_40] : memref<496x256xbf16, #tpu.memory_space<vmem>>, vector<32x256xbf16>
    %cst_41 = arith.constant dense<0.000000e+00> : vector<16x256xf32>
    %111 = tpu.matmul %109, %110, %cst_41 {dimension_numbers = #tpu.dot_dimension_numbers<[1], [0], [0], [1], [0, 0, 1, 1], [], []>} : vector<16x32xbf16>, vector<32x256xbf16>, vector<16x256xf32> -> vector<16x256xf32>
    %c17 = arith.constant 17 : index
    %c0_42 = arith.constant 0 : index
    %112 = vector.load %arg2[%c17, %c0_42] : memref<24x256xf32, #tpu.memory_space<vmem>>, vector<1x256xf32>
    %113 = vector.broadcast %112 : vector<1x256xf32> to vector<16x256xf32>
    %114 = arith.addf %111, %113 : vector<16x256xf32>
    %c240 = arith.constant 240 : index
    %c0_43 = arith.constant 0 : index
    %115 = vector.load %arg1[%c240, %c0_43] : memref<496x256xbf16, #tpu.memory_space<vmem>>, vector<32x256xbf16>
    %cst_44 = arith.constant dense<0.000000e+00> : vector<16x256xf32>
    %116 = tpu.matmul %109, %115, %cst_44 {dimension_numbers = #tpu.dot_dimension_numbers<[1], [0], [0], [1], [0, 0, 1, 1], [], []>} : vector<16x32xbf16>, vector<32x256xbf16>, vector<16x256xf32> -> vector<16x256xf32>
    %c272 = arith.constant 272 : index
    %c0_45 = arith.constant 0 : index
    %117 = vector.load %arg1[%c272, %c0_45] : memref<496x256xbf16, #tpu.memory_space<vmem>>, vector<64x256xbf16>
    %cst_46 = arith.constant 0.000000e+00 : f32
    %118 = vector.broadcast %cst_46 : f32 to vector<2x64xf32>
    %cst_47 = arith.constant 0.000000e+00 : f32
    %119 = vector.broadcast %cst_47 : f32 to vector<2x64xf32>
    %120 = vector.extract_strided_slice %114 {offsets = [0, 0], sizes = [2, 256], strides = [1, 1]} : vector<16x256xf32> to vector<2x256xf32>
    %121 = vector.extract_strided_slice %116 {offsets = [14, 0], sizes = [2, 256], strides = [1, 1]} : vector<16x256xf32> to vector<2x256xf32>
    %122 = arith.addf %120, %121 : vector<2x256xf32>
    %123 = arith.truncf %118 : vector<2x64xf32> to vector<2x64xbf16>
    %cst_48 = arith.constant dense<0.000000e+00> : vector<2x256xf32>
    %124 = tpu.matmul %123, %117, %cst_48 {dimension_numbers = #tpu.dot_dimension_numbers<[1], [0], [0], [1], [0, 0, 1, 1], [], []>} : vector<2x64xbf16>, vector<64x256xbf16>, vector<2x256xf32> -> vector<2x256xf32>
    %125 = arith.addf %122, %124 : vector<2x256xf32>
    %126 = arith.negf %125 : vector<2x256xf32>
    %127 = math.exp %126 : vector<2x256xf32>
    %cst_49 = arith.constant 1.000000e+00 : f32
    %128 = vector.broadcast %cst_49 : f32 to vector<2x256xf32>
    %129 = arith.addf %128, %127 : vector<2x256xf32>
    %130 = arith.divf %128, %129 : vector<2x256xf32>
    %131 = math.tanh %125 : vector<2x256xf32>
    %132 = vector.extract_strided_slice %130 {offsets = [0, 0], sizes = [2, 64], strides = [1, 1]} : vector<2x256xf32> to vector<2x64xf32>
    %133 = vector.extract_strided_slice %130 {offsets = [0, 64], sizes = [2, 64], strides = [1, 1]} : vector<2x256xf32> to vector<2x64xf32>
    %134 = vector.extract_strided_slice %131 {offsets = [0, 128], sizes = [2, 64], strides = [1, 1]} : vector<2x256xf32> to vector<2x64xf32>
    %135 = vector.extract_strided_slice %130 {offsets = [0, 192], sizes = [2, 64], strides = [1, 1]} : vector<2x256xf32> to vector<2x64xf32>
    %136 = arith.mulf %133, %119 : vector<2x64xf32>
    %137 = arith.mulf %132, %134 : vector<2x64xf32>
    %138 = arith.addf %136, %137 : vector<2x64xf32>
    %139 = math.tanh %138 : vector<2x64xf32>
    %140 = arith.mulf %135, %139 : vector<2x64xf32>
    %141 = vector.extract_strided_slice %140 {offsets = [0, 0], sizes = [2, 32], strides = [1, 1]} : vector<2x64xf32> to vector<2x32xf32>
    %c0_50 = arith.constant 0 : index
    %c0_51 = arith.constant 0 : index
    %142 = vector.load %arg4[%c0_50, %c0_51] : memref<16x64xf32, #tpu.memory_space<vmem>>, vector<2x32xf32>
    tpu.vector_store %arg4[%c0_50, %c0_51], %141 {strides = array<i32>} : memref<16x64xf32, #tpu.memory_space<vmem>>, vector<2x32xf32>,
    %143 = vector.extract_strided_slice %140 {offsets = [0, 32], sizes = [2, 32], strides = [1, 1]} : vector<2x64xf32> to vector<2x32xf32>
    %c14 = arith.constant 14 : index
    %c32 = arith.constant 32 : index
    %144 = vector.load %arg4[%c14, %c32] : memref<16x64xf32, #tpu.memory_space<vmem>>, vector<2x32xf32>
    tpu.vector_store %arg4[%c14, %c32], %143 {strides = array<i32>} : memref<16x64xf32, #tpu.memory_space<vmem>>, vector<2x32xf32>,
    %145 = vector.extract_strided_slice %114 {offsets = [2, 0], sizes = [2, 256], strides = [1, 1]} : vector<16x256xf32> to vector<2x256xf32>
    %146 = vector.extract_strided_slice %116 {offsets = [12, 0], sizes = [2, 256], strides = [1, 1]} : vector<16x256xf32> to vector<2x256xf32>
    %147 = arith.addf %145, %146 : vector<2x256xf32>
    %148 = arith.truncf %140 : vector<2x64xf32> to vector<2x64xbf16>
    %cst_52 = arith.constant dense<0.000000e+00> : vector<2x256xf32>
    %149 = tpu.matmul %148, %117, %cst_52 {dimension_numbers = #tpu.dot_dimension_numbers<[1], [0], [0], [1], [0, 0, 1, 1], [], []>} : vector<2x64xbf16>, vector<64x256xbf16>, vector<2x256xf32> -> vector<2x256xf32>
    %150 = arith.addf %147, %149 : vector<2x256xf32>
    %151 = arith.negf %150 : vector<2x256xf32>
    %152 = math.exp %151 : vector<2x256xf32>
    %cst_53 = arith.constant 1.000000e+00 : f32
    %153 = vector.broadcast %cst_53 : f32 to vector<2x256xf32>
    %154 = arith.addf %153, %152 : vector<2x256xf32>
    %155 = arith.divf %153, %154 : vector<2x256xf32>
    %156 = math.tanh %150 : vector<2x256xf32>
    %157 = vector.extract_strided_slice %155 {offsets = [0, 0], sizes = [2, 64], strides = [1, 1]} : vector<2x256xf32> to vector<2x64xf32>
    %158 = vector.extract_strided_slice %155 {offsets = [0, 64], sizes = [2, 64], strides = [1, 1]} : vector<2x256xf32> to vector<2x64xf32>
    %159 = vector.extract_strided_slice %156 {offsets = [0, 128], sizes = [2, 64], strides = [1, 1]} : vector<2x256xf32> to vector<2x64xf32>
    %160 = vector.extract_strided_slice %155 {offsets = [0, 192], sizes = [2, 64], strides = [1, 1]} : vector<2x256xf32> to vector<2x64xf32>
    %161 = arith.mulf %158, %138 : vector<2x64xf32>
    %162 = arith.mulf %157, %159 : vector<2x64xf32>
    %163 = arith.addf %161, %162 : vector<2x64xf32>
    %164 = math.tanh %163 : vector<2x64xf32>
    %165 = arith.mulf %160, %164 : vector<2x64xf32>
    %166 = vector.extract_strided_slice %165 {offsets = [0, 0], sizes = [2, 32], strides = [1, 1]} : vector<2x64xf32> to vector<2x32xf32>
    %c2_54 = arith.constant 2 : index
    %c0_55 = arith.constant 0 : index
    %167 = vector.load %arg4[%c2_54, %c0_55] : memref<16x64xf32, #tpu.memory_space<vmem>>, vector<2x32xf32>
    tpu.vector_store %arg4[%c2_54, %c0_55], %166 {strides = array<i32>} : memref<16x64xf32, #tpu.memory_space<vmem>>, vector<2x32xf32>,
    %168 = vector.extract_strided_slice %165 {offsets = [0, 32], sizes = [2, 32], strides = [1, 1]} : vector<2x64xf32> to vector<2x32xf32>
    %c12 = arith.constant 12 : index
    %c32_56 = arith.constant 32 : index
    %169 = vector.load %arg4[%c12, %c32_56] : memref<16x64xf32, #tpu.memory_space<vmem>>, vector<2x32xf32>
    tpu.vector_store %arg4[%c12, %c32_56], %168 {strides = array<i32>} : memref<16x64xf32, #tpu.memory_space<vmem>>, vector<2x32xf32>,
    %170 = vector.extract_strided_slice %114 {offsets = [4, 0], sizes = [2, 256], strides = [1, 1]} : vector<16x256xf32> to vector<2x256xf32>
    %171 = vector.extract_strided_slice %116 {offsets = [10, 0], sizes = [2, 256], strides = [1, 1]} : vector<16x256xf32> to vector<2x256xf32>
    %172 = arith.addf %170, %171 : vector<2x256xf32>
    %173 = arith.truncf %165 : vector<2x64xf32> to vector<2x64xbf16>
    %cst_57 = arith.constant dense<0.000000e+00> : vector<2x256xf32>
    %174 = tpu.matmul %173, %117, %cst_57 {dimension_numbers = #tpu.dot_dimension_numbers<[1], [0], [0], [1], [0, 0, 1, 1], [], []>} : vector<2x64xbf16>, vector<64x256xbf16>, vector<2x256xf32> -> vector<2x256xf32>
    %175 = arith.addf %172, %174 : vector<2x256xf32>
    %176 = arith.negf %175 : vector<2x256xf32>
    %177 = math.exp %176 : vector<2x256xf32>
    %cst_58 = arith.constant 1.000000e+00 : f32
    %178 = vector.broadcast %cst_58 : f32 to vector<2x256xf32>
    %179 = arith.addf %178, %177 : vector<2x256xf32>
    %180 = arith.divf %178, %179 : vector<2x256xf32>
    %181 = math.tanh %175 : vector<2x256xf32>
    %182 = vector.extract_strided_slice %180 {offsets = [0, 0], sizes = [2, 64], strides = [1, 1]} : vector<2x256xf32> to vector<2x64xf32>
    %183 = vector.extract_strided_slice %180 {offsets = [0, 64], sizes = [2, 64], strides = [1, 1]} : vector<2x256xf32> to vector<2x64xf32>
    %184 = vector.extract_strided_slice %181 {offsets = [0, 128], sizes = [2, 64], strides = [1, 1]} : vector<2x256xf32> to vector<2x64xf32>
    %185 = vector.extract_strided_slice %180 {offsets = [0, 192], sizes = [2, 64], strides = [1, 1]} : vector<2x256xf32> to vector<2x64xf32>
    %186 = arith.mulf %183, %163 : vector<2x64xf32>
    %187 = arith.mulf %182, %184 : vector<2x64xf32>
    %188 = arith.addf %186, %187 : vector<2x64xf32>
    %189 = math.tanh %188 : vector<2x64xf32>
    %190 = arith.mulf %185, %189 : vector<2x64xf32>
    %191 = vector.extract_strided_slice %190 {offsets = [0, 0], sizes = [2, 32], strides = [1, 1]} : vector<2x64xf32> to vector<2x32xf32>
    %c4_59 = arith.constant 4 : index
    %c0_60 = arith.constant 0 : index
    %192 = vector.load %arg4[%c4_59, %c0_60] : memref<16x64xf32, #tpu.memory_space<vmem>>, vector<2x32xf32>
    tpu.vector_store %arg4[%c4_59, %c0_60], %191 {strides = array<i32>} : memref<16x64xf32, #tpu.memory_space<vmem>>, vector<2x32xf32>,
    %193 = vector.extract_strided_slice %190 {offsets = [0, 32], sizes = [2, 32], strides = [1, 1]} : vector<2x64xf32> to vector<2x32xf32>
    %c10_61 = arith.constant 10 : index
    %c32_62 = arith.constant 32 : index
    %194 = vector.load %arg4[%c10_61, %c32_62] : memref<16x64xf32, #tpu.memory_space<vmem>>, vector<2x32xf32>
    tpu.vector_store %arg4[%c10_61, %c32_62], %193 {strides = array<i32>} : memref<16x64xf32, #tpu.memory_space<vmem>>, vector<2x32xf32>,
    %195 = vector.extract_strided_slice %114 {offsets = [6, 0], sizes = [2, 256], strides = [1, 1]} : vector<16x256xf32> to vector<2x256xf32>
    %196 = vector.extract_strided_slice %116 {offsets = [8, 0], sizes = [2, 256], strides = [1, 1]} : vector<16x256xf32> to vector<2x256xf32>
    %197 = arith.addf %195, %196 : vector<2x256xf32>
    %198 = arith.truncf %190 : vector<2x64xf32> to vector<2x64xbf16>
    %cst_63 = arith.constant dense<0.000000e+00> : vector<2x256xf32>
    %199 = tpu.matmul %198, %117, %cst_63 {dimension_numbers = #tpu.dot_dimension_numbers<[1], [0], [0], [1], [0, 0, 1, 1], [], []>} : vector<2x64xbf16>, vector<64x256xbf16>, vector<2x256xf32> -> vector<2x256xf32>
    %200 = arith.addf %197, %199 : vector<2x256xf32>
    %201 = arith.negf %200 : vector<2x256xf32>
    %202 = math.exp %201 : vector<2x256xf32>
    %cst_64 = arith.constant 1.000000e+00 : f32
    %203 = vector.broadcast %cst_64 : f32 to vector<2x256xf32>
    %204 = arith.addf %203, %202 : vector<2x256xf32>
    %205 = arith.divf %203, %204 : vector<2x256xf32>
    %206 = math.tanh %200 : vector<2x256xf32>
    %207 = vector.extract_strided_slice %205 {offsets = [0, 0], sizes = [2, 64], strides = [1, 1]} : vector<2x256xf32> to vector<2x64xf32>
    %208 = vector.extract_strided_slice %205 {offsets = [0, 64], sizes = [2, 64], strides = [1, 1]} : vector<2x256xf32> to vector<2x64xf32>
    %209 = vector.extract_strided_slice %206 {offsets = [0, 128], sizes = [2, 64], strides = [1, 1]} : vector<2x256xf32> to vector<2x64xf32>
    %210 = vector.extract_strided_slice %205 {offsets = [0, 192], sizes = [2, 64], strides = [1, 1]} : vector<2x256xf32> to vector<2x64xf32>
    %211 = arith.mulf %208, %188 : vector<2x64xf32>
    %212 = arith.mulf %207, %209 : vector<2x64xf32>
    %213 = arith.addf %211, %212 : vector<2x64xf32>
    %214 = math.tanh %213 : vector<2x64xf32>
    %215 = arith.mulf %210, %214 : vector<2x64xf32>
    %216 = vector.extract_strided_slice %215 {offsets = [0, 0], sizes = [2, 32], strides = [1, 1]} : vector<2x64xf32> to vector<2x32xf32>
    %c6_65 = arith.constant 6 : index
    %c0_66 = arith.constant 0 : index
    %217 = vector.load %arg4[%c6_65, %c0_66] : memref<16x64xf32, #tpu.memory_space<vmem>>, vector<2x32xf32>
    tpu.vector_store %arg4[%c6_65, %c0_66], %216 {strides = array<i32>} : memref<16x64xf32, #tpu.memory_space<vmem>>, vector<2x32xf32>,
    %218 = vector.extract_strided_slice %215 {offsets = [0, 32], sizes = [2, 32], strides = [1, 1]} : vector<2x64xf32> to vector<2x32xf32>
    %c8_67 = arith.constant 8 : index
    %c32_68 = arith.constant 32 : index
    %219 = vector.load %arg4[%c8_67, %c32_68] : memref<16x64xf32, #tpu.memory_space<vmem>>, vector<2x32xf32>
    tpu.vector_store %arg4[%c8_67, %c32_68], %218 {strides = array<i32>} : memref<16x64xf32, #tpu.memory_space<vmem>>, vector<2x32xf32>,
    %220 = vector.extract_strided_slice %114 {offsets = [8, 0], sizes = [2, 256], strides = [1, 1]} : vector<16x256xf32> to vector<2x256xf32>
    %221 = vector.extract_strided_slice %116 {offsets = [6, 0], sizes = [2, 256], strides = [1, 1]} : vector<16x256xf32> to vector<2x256xf32>
    %222 = arith.addf %220, %221 : vector<2x256xf32>
    %223 = arith.truncf %215 : vector<2x64xf32> to vector<2x64xbf16>
    %cst_69 = arith.constant dense<0.000000e+00> : vector<2x256xf32>
    %224 = tpu.matmul %223, %117, %cst_69 {dimension_numbers = #tpu.dot_dimension_numbers<[1], [0], [0], [1], [0, 0, 1, 1], [], []>} : vector<2x64xbf16>, vector<64x256xbf16>, vector<2x256xf32> -> vector<2x256xf32>
    %225 = arith.addf %222, %224 : vector<2x256xf32>
    %226 = arith.negf %225 : vector<2x256xf32>
    %227 = math.exp %226 : vector<2x256xf32>
    %cst_70 = arith.constant 1.000000e+00 : f32
    %228 = vector.broadcast %cst_70 : f32 to vector<2x256xf32>
    %229 = arith.addf %228, %227 : vector<2x256xf32>
    %230 = arith.divf %228, %229 : vector<2x256xf32>
    %231 = math.tanh %225 : vector<2x256xf32>
    %232 = vector.extract_strided_slice %230 {offsets = [0, 0], sizes = [2, 64], strides = [1, 1]} : vector<2x256xf32> to vector<2x64xf32>
    %233 = vector.extract_strided_slice %230 {offsets = [0, 64], sizes = [2, 64], strides = [1, 1]} : vector<2x256xf32> to vector<2x64xf32>
    %234 = vector.extract_strided_slice %231 {offsets = [0, 128], sizes = [2, 64], strides = [1, 1]} : vector<2x256xf32> to vector<2x64xf32>
    %235 = vector.extract_strided_slice %230 {offsets = [0, 192], sizes = [2, 64], strides = [1, 1]} : vector<2x256xf32> to vector<2x64xf32>
    %236 = arith.mulf %233, %213 : vector<2x64xf32>
    %237 = arith.mulf %232, %234 : vector<2x64xf32>
    %238 = arith.addf %236, %237 : vector<2x64xf32>
    %239 = math.tanh %238 : vector<2x64xf32>
    %240 = arith.mulf %235, %239 : vector<2x64xf32>
    %241 = vector.extract_strided_slice %240 {offsets = [0, 0], sizes = [2, 32], strides = [1, 1]} : vector<2x64xf32> to vector<2x32xf32>
    %c8_71 = arith.constant 8 : index
    %c0_72 = arith.constant 0 : index
    %242 = vector.load %arg4[%c8_71, %c0_72] : memref<16x64xf32, #tpu.memory_space<vmem>>, vector<2x32xf32>
    tpu.vector_store %arg4[%c8_71, %c0_72], %241 {strides = array<i32>} : memref<16x64xf32, #tpu.memory_space<vmem>>, vector<2x32xf32>,
    %243 = vector.extract_strided_slice %240 {offsets = [0, 32], sizes = [2, 32], strides = [1, 1]} : vector<2x64xf32> to vector<2x32xf32>
    %c6_73 = arith.constant 6 : index
    %c32_74 = arith.constant 32 : index
    %244 = vector.load %arg4[%c6_73, %c32_74] : memref<16x64xf32, #tpu.memory_space<vmem>>, vector<2x32xf32>
    tpu.vector_store %arg4[%c6_73, %c32_74], %243 {strides = array<i32>} : memref<16x64xf32, #tpu.memory_space<vmem>>, vector<2x32xf32>,
    %245 = vector.extract_strided_slice %114 {offsets = [10, 0], sizes = [2, 256], strides = [1, 1]} : vector<16x256xf32> to vector<2x256xf32>
    %246 = vector.extract_strided_slice %116 {offsets = [4, 0], sizes = [2, 256], strides = [1, 1]} : vector<16x256xf32> to vector<2x256xf32>
    %247 = arith.addf %245, %246 : vector<2x256xf32>
    %248 = arith.truncf %240 : vector<2x64xf32> to vector<2x64xbf16>
    %cst_75 = arith.constant dense<0.000000e+00> : vector<2x256xf32>
    %249 = tpu.matmul %248, %117, %cst_75 {dimension_numbers = #tpu.dot_dimension_numbers<[1], [0], [0], [1], [0, 0, 1, 1], [], []>} : vector<2x64xbf16>, vector<64x256xbf16>, vector<2x256xf32> -> vector<2x256xf32>
    %250 = arith.addf %247, %249 : vector<2x256xf32>
    %251 = arith.negf %250 : vector<2x256xf32>
    %252 = math.exp %251 : vector<2x256xf32>
    %cst_76 = arith.constant 1.000000e+00 : f32
    %253 = vector.broadcast %cst_76 : f32 to vector<2x256xf32>
    %254 = arith.addf %253, %252 : vector<2x256xf32>
    %255 = arith.divf %253, %254 : vector<2x256xf32>
    %256 = math.tanh %250 : vector<2x256xf32>
    %257 = vector.extract_strided_slice %255 {offsets = [0, 0], sizes = [2, 64], strides = [1, 1]} : vector<2x256xf32> to vector<2x64xf32>
    %258 = vector.extract_strided_slice %255 {offsets = [0, 64], sizes = [2, 64], strides = [1, 1]} : vector<2x256xf32> to vector<2x64xf32>
    %259 = vector.extract_strided_slice %256 {offsets = [0, 128], sizes = [2, 64], strides = [1, 1]} : vector<2x256xf32> to vector<2x64xf32>
    %260 = vector.extract_strided_slice %255 {offsets = [0, 192], sizes = [2, 64], strides = [1, 1]} : vector<2x256xf32> to vector<2x64xf32>
    %261 = arith.mulf %258, %238 : vector<2x64xf32>
    %262 = arith.mulf %257, %259 : vector<2x64xf32>
    %263 = arith.addf %261, %262 : vector<2x64xf32>
    %264 = math.tanh %263 : vector<2x64xf32>
    %265 = arith.mulf %260, %264 : vector<2x64xf32>
    %266 = vector.extract_strided_slice %265 {offsets = [0, 0], sizes = [2, 32], strides = [1, 1]} : vector<2x64xf32> to vector<2x32xf32>
    %c10_77 = arith.constant 10 : index
    %c0_78 = arith.constant 0 : index
    %267 = vector.load %arg4[%c10_77, %c0_78] : memref<16x64xf32, #tpu.memory_space<vmem>>, vector<2x32xf32>
    tpu.vector_store %arg4[%c10_77, %c0_78], %266 {strides = array<i32>} : memref<16x64xf32, #tpu.memory_space<vmem>>, vector<2x32xf32>,
    %268 = vector.extract_strided_slice %265 {offsets = [0, 32], sizes = [2, 32], strides = [1, 1]} : vector<2x64xf32> to vector<2x32xf32>
    %c4_79 = arith.constant 4 : index
    %c32_80 = arith.constant 32 : index
    %269 = vector.load %arg4[%c4_79, %c32_80] : memref<16x64xf32, #tpu.memory_space<vmem>>, vector<2x32xf32>
    tpu.vector_store %arg4[%c4_79, %c32_80], %268 {strides = array<i32>} : memref<16x64xf32, #tpu.memory_space<vmem>>, vector<2x32xf32>,
    %270 = vector.extract_strided_slice %114 {offsets = [12, 0], sizes = [2, 256], strides = [1, 1]} : vector<16x256xf32> to vector<2x256xf32>
    %271 = vector.extract_strided_slice %116 {offsets = [2, 0], sizes = [2, 256], strides = [1, 1]} : vector<16x256xf32> to vector<2x256xf32>
    %272 = arith.addf %270, %271 : vector<2x256xf32>
    %273 = arith.truncf %265 : vector<2x64xf32> to vector<2x64xbf16>
    %cst_81 = arith.constant dense<0.000000e+00> : vector<2x256xf32>
    %274 = tpu.matmul %273, %117, %cst_81 {dimension_numbers = #tpu.dot_dimension_numbers<[1], [0], [0], [1], [0, 0, 1, 1], [], []>} : vector<2x64xbf16>, vector<64x256xbf16>, vector<2x256xf32> -> vector<2x256xf32>
    %275 = arith.addf %272, %274 : vector<2x256xf32>
    %276 = arith.negf %275 : vector<2x256xf32>
    %277 = math.exp %276 : vector<2x256xf32>
    %cst_82 = arith.constant 1.000000e+00 : f32
    %278 = vector.broadcast %cst_82 : f32 to vector<2x256xf32>
    %279 = arith.addf %278, %277 : vector<2x256xf32>
    %280 = arith.divf %278, %279 : vector<2x256xf32>
    %281 = math.tanh %275 : vector<2x256xf32>
    %282 = vector.extract_strided_slice %280 {offsets = [0, 0], sizes = [2, 64], strides = [1, 1]} : vector<2x256xf32> to vector<2x64xf32>
    %283 = vector.extract_strided_slice %280 {offsets = [0, 64], sizes = [2, 64], strides = [1, 1]} : vector<2x256xf32> to vector<2x64xf32>
    %284 = vector.extract_strided_slice %281 {offsets = [0, 128], sizes = [2, 64], strides = [1, 1]} : vector<2x256xf32> to vector<2x64xf32>
    %285 = vector.extract_strided_slice %280 {offsets = [0, 192], sizes = [2, 64], strides = [1, 1]} : vector<2x256xf32> to vector<2x64xf32>
    %286 = arith.mulf %283, %263 : vector<2x64xf32>
    %287 = arith.mulf %282, %284 : vector<2x64xf32>
    %288 = arith.addf %286, %287 : vector<2x64xf32>
    %289 = math.tanh %288 : vector<2x64xf32>
    %290 = arith.mulf %285, %289 : vector<2x64xf32>
    %291 = vector.extract_strided_slice %290 {offsets = [0, 0], sizes = [2, 32], strides = [1, 1]} : vector<2x64xf32> to vector<2x32xf32>
    %c12_83 = arith.constant 12 : index
    %c0_84 = arith.constant 0 : index
    %292 = vector.load %arg4[%c12_83, %c0_84] : memref<16x64xf32, #tpu.memory_space<vmem>>, vector<2x32xf32>
    tpu.vector_store %arg4[%c12_83, %c0_84], %291 {strides = array<i32>} : memref<16x64xf32, #tpu.memory_space<vmem>>, vector<2x32xf32>,
    %293 = vector.extract_strided_slice %290 {offsets = [0, 32], sizes = [2, 32], strides = [1, 1]} : vector<2x64xf32> to vector<2x32xf32>
    %c2_85 = arith.constant 2 : index
    %c32_86 = arith.constant 32 : index
    %294 = vector.load %arg4[%c2_85, %c32_86] : memref<16x64xf32, #tpu.memory_space<vmem>>, vector<2x32xf32>
    tpu.vector_store %arg4[%c2_85, %c32_86], %293 {strides = array<i32>} : memref<16x64xf32, #tpu.memory_space<vmem>>, vector<2x32xf32>,
    %295 = vector.extract_strided_slice %114 {offsets = [14, 0], sizes = [2, 256], strides = [1, 1]} : vector<16x256xf32> to vector<2x256xf32>
    %296 = vector.extract_strided_slice %116 {offsets = [0, 0], sizes = [2, 256], strides = [1, 1]} : vector<16x256xf32> to vector<2x256xf32>
    %297 = arith.addf %295, %296 : vector<2x256xf32>
    %298 = arith.truncf %290 : vector<2x64xf32> to vector<2x64xbf16>
    %cst_87 = arith.constant dense<0.000000e+00> : vector<2x256xf32>
    %299 = tpu.matmul %298, %117, %cst_87 {dimension_numbers = #tpu.dot_dimension_numbers<[1], [0], [0], [1], [0, 0, 1, 1], [], []>} : vector<2x64xbf16>, vector<64x256xbf16>, vector<2x256xf32> -> vector<2x256xf32>
    %300 = arith.addf %297, %299 : vector<2x256xf32>
    %301 = arith.negf %300 : vector<2x256xf32>
    %302 = math.exp %301 : vector<2x256xf32>
    %cst_88 = arith.constant 1.000000e+00 : f32
    %303 = vector.broadcast %cst_88 : f32 to vector<2x256xf32>
    %304 = arith.addf %303, %302 : vector<2x256xf32>
    %305 = arith.divf %303, %304 : vector<2x256xf32>
    %306 = math.tanh %300 : vector<2x256xf32>
    %307 = vector.extract_strided_slice %305 {offsets = [0, 0], sizes = [2, 64], strides = [1, 1]} : vector<2x256xf32> to vector<2x64xf32>
    %308 = vector.extract_strided_slice %305 {offsets = [0, 64], sizes = [2, 64], strides = [1, 1]} : vector<2x256xf32> to vector<2x64xf32>
    %309 = vector.extract_strided_slice %306 {offsets = [0, 128], sizes = [2, 64], strides = [1, 1]} : vector<2x256xf32> to vector<2x64xf32>
    %310 = vector.extract_strided_slice %305 {offsets = [0, 192], sizes = [2, 64], strides = [1, 1]} : vector<2x256xf32> to vector<2x64xf32>
    %311 = arith.mulf %308, %288 : vector<2x64xf32>
    %312 = arith.mulf %307, %309 : vector<2x64xf32>
    %313 = arith.addf %311, %312 : vector<2x64xf32>
    %314 = math.tanh %313 : vector<2x64xf32>
    %315 = arith.mulf %310, %314 : vector<2x64xf32>
    %316 = vector.extract_strided_slice %315 {offsets = [0, 0], sizes = [2, 32], strides = [1, 1]} : vector<2x64xf32> to vector<2x32xf32>
    %c14_89 = arith.constant 14 : index
    %c0_90 = arith.constant 0 : index
    %317 = vector.load %arg4[%c14_89, %c0_90] : memref<16x64xf32, #tpu.memory_space<vmem>>, vector<2x32xf32>
    tpu.vector_store %arg4[%c14_89, %c0_90], %316 {strides = array<i32>} : memref<16x64xf32, #tpu.memory_space<vmem>>, vector<2x32xf32>,
    %318 = vector.extract_strided_slice %315 {offsets = [0, 32], sizes = [2, 32], strides = [1, 1]} : vector<2x64xf32> to vector<2x32xf32>
    %c0_91 = arith.constant 0 : index
    %c32_92 = arith.constant 32 : index
    %319 = vector.load %arg4[%c0_91, %c32_92] : memref<16x64xf32, #tpu.memory_space<vmem>>, vector<2x32xf32>
    tpu.vector_store %arg4[%c0_91, %c32_92], %318 {strides = array<i32>} : memref<16x64xf32, #tpu.memory_space<vmem>>, vector<2x32xf32>,
    %c0_93 = arith.constant 0 : index
    %c0_94 = arith.constant 0 : index
    %320 = vector.load %arg4[%c0_93, %c0_94] : memref<16x64xf32, #tpu.memory_space<vmem>>, vector<16x64xf32>
    %321 = arith.truncf %320 : vector<16x64xf32> to vector<16x64xbf16>
    %cst_95 = arith.constant 0.000000e+00 : f32
    %322 = vector.broadcast %cst_95 : f32 to vector<2x32xf32>
    %323 = vector.extract_strided_slice %321 {offsets = [14, 0], sizes = [2, 64], strides = [1, 1]} : vector<16x64xbf16> to vector<2x64xbf16>
    %c400 = arith.constant 400 : index
    %c0_96 = arith.constant 0 : index
    %324 = vector.load %arg1[%c400, %c0_96] : memref<496x256xbf16, #tpu.memory_space<vmem>>, vector<64x128xbf16>
    %cst_97 = arith.constant dense<0.000000e+00> : vector<2x128xf32>
    %325 = tpu.matmul %323, %324, %cst_97 {dimension_numbers = #tpu.dot_dimension_numbers<[1], [0], [0], [1], [0, 0, 1, 1], [], []>} : vector<2x64xbf16>, vector<64x128xbf16>, vector<2x128xf32> -> vector<2x128xf32>
    %c19 = arith.constant 19 : index
    %c0_98 = arith.constant 0 : index
    %326 = vector.load %arg2[%c19, %c0_98] : memref<24x256xf32, #tpu.memory_space<vmem>>, vector<1x128xf32>
    %327 = vector.broadcast %326 : vector<1x128xf32> to vector<2x128xf32>
    %328 = arith.addf %325, %327 : vector<2x128xf32>
    %329 = arith.negf %328 : vector<2x128xf32>
    %330 = math.exp %329 : vector<2x128xf32>
    %cst_99 = arith.constant 1.000000e+00 : f32
    %331 = vector.broadcast %cst_99 : f32 to vector<2x128xf32>
    %332 = arith.addf %331, %330 : vector<2x128xf32>
    %333 = arith.divf %331, %332 : vector<2x128xf32>
    %334 = math.tanh %328 : vector<2x128xf32>
    %335 = vector.extract_strided_slice %333 {offsets = [0, 0], sizes = [2, 32], strides = [1, 1]} : vector<2x128xf32> to vector<2x32xf32>
    %336 = vector.extract_strided_slice %333 {offsets = [0, 32], sizes = [2, 32], strides = [1, 1]} : vector<2x128xf32> to vector<2x32xf32>
    %337 = vector.extract_strided_slice %333 {offsets = [0, 96], sizes = [2, 32], strides = [1, 1]} : vector<2x128xf32> to vector<2x32xf32>
    %338 = vector.extract_strided_slice %334 {offsets = [0, 64], sizes = [2, 32], strides = [1, 1]} : vector<2x128xf32> to vector<2x32xf32>
    %339 = arith.mulf %336, %322 : vector<2x32xf32>
    %340 = arith.mulf %335, %338 : vector<2x32xf32>
    %341 = arith.addf %339, %340 : vector<2x32xf32>
    %342 = math.tanh %341 : vector<2x32xf32>
    %343 = arith.mulf %337, %342 : vector<2x32xf32>
    %c336 = arith.constant 336 : index
    %c0_100 = arith.constant 0 : index
    %344 = vector.load %arg1[%c336, %c0_100] : memref<496x256xbf16, #tpu.memory_space<vmem>>, vector<64x128xbf16>
    %cst_101 = arith.constant dense<0.000000e+00> : vector<16x128xf32>
    %345 = tpu.matmul %321, %344, %cst_101 {dimension_numbers = #tpu.dot_dimension_numbers<[1], [0], [0], [1], [0, 0, 1, 1], [], []>} : vector<16x64xbf16>, vector<64x128xbf16>, vector<16x128xf32> -> vector<16x128xf32>
    %c18 = arith.constant 18 : index
    %c0_102 = arith.constant 0 : index
    %346 = vector.load %arg2[%c18, %c0_102] : memref<24x256xf32, #tpu.memory_space<vmem>>, vector<1x128xf32>
    %347 = vector.broadcast %346 : vector<1x128xf32> to vector<16x128xf32>
    %348 = arith.addf %345, %347 : vector<16x128xf32>
    %c464 = arith.constant 464 : index
    %c0_103 = arith.constant 0 : index
    %349 = vector.load %arg1[%c464, %c0_103] : memref<496x256xbf16, #tpu.memory_space<vmem>>, vector<32x128xbf16>
    %350 = vector.extract_strided_slice %348 {offsets = [0, 0], sizes = [2, 128], strides = [1, 1]} : vector<16x128xf32> to vector<2x128xf32>
    %351 = arith.truncf %322 : vector<2x32xf32> to vector<2x32xbf16>
    %cst_104 = arith.constant dense<0.000000e+00> : vector<2x128xf32>
    %352 = tpu.matmul %351, %349, %cst_104 {dimension_numbers = #tpu.dot_dimension_numbers<[1], [0], [0], [1], [0, 0, 1, 1], [], []>} : vector<2x32xbf16>, vector<32x128xbf16>, vector<2x128xf32> -> vector<2x128xf32>
    %353 = arith.addf %350, %352 : vector<2x128xf32>
    %354 = arith.negf %353 : vector<2x128xf32>
    %355 = math.exp %354 : vector<2x128xf32>
    %cst_105 = arith.constant 1.000000e+00 : f32
    %356 = vector.broadcast %cst_105 : f32 to vector<2x128xf32>
    %357 = arith.addf %356, %355 : vector<2x128xf32>
    %358 = arith.divf %356, %357 : vector<2x128xf32>
    %359 = math.tanh %353 : vector<2x128xf32>
    %360 = vector.extract_strided_slice %358 {offsets = [0, 0], sizes = [2, 32], strides = [1, 1]} : vector<2x128xf32> to vector<2x32xf32>
    %361 = vector.extract_strided_slice %358 {offsets = [0, 32], sizes = [2, 32], strides = [1, 1]} : vector<2x128xf32> to vector<2x32xf32>
    %362 = vector.extract_strided_slice %358 {offsets = [0, 96], sizes = [2, 32], strides = [1, 1]} : vector<2x128xf32> to vector<2x32xf32>
    %363 = vector.extract_strided_slice %359 {offsets = [0, 64], sizes = [2, 32], strides = [1, 1]} : vector<2x128xf32> to vector<2x32xf32>
    %364 = arith.mulf %361, %322 : vector<2x32xf32>
    %365 = arith.mulf %360, %363 : vector<2x32xf32>
    %366 = arith.addf %364, %365 : vector<2x32xf32>
    %367 = math.tanh %366 : vector<2x32xf32>
    %368 = arith.mulf %362, %367 : vector<2x32xf32>
    %369 = vector.extract_strided_slice %348 {offsets = [2, 0], sizes = [2, 128], strides = [1, 1]} : vector<16x128xf32> to vector<2x128xf32>
    %370 = arith.truncf %368 : vector<2x32xf32> to vector<2x32xbf16>
    %cst_106 = arith.constant dense<0.000000e+00> : vector<2x128xf32>
    %371 = tpu.matmul %370, %349, %cst_106 {dimension_numbers = #tpu.dot_dimension_numbers<[1], [0], [0], [1], [0, 0, 1, 1], [], []>} : vector<2x32xbf16>, vector<32x128xbf16>, vector<2x128xf32> -> vector<2x128xf32>
    %372 = arith.addf %369, %371 : vector<2x128xf32>
    %373 = arith.negf %372 : vector<2x128xf32>
    %374 = math.exp %373 : vector<2x128xf32>
    %cst_107 = arith.constant 1.000000e+00 : f32
    %375 = vector.broadcast %cst_107 : f32 to vector<2x128xf32>
    %376 = arith.addf %375, %374 : vector<2x128xf32>
    %377 = arith.divf %375, %376 : vector<2x128xf32>
    %378 = math.tanh %372 : vector<2x128xf32>
    %379 = vector.extract_strided_slice %377 {offsets = [0, 0], sizes = [2, 32], strides = [1, 1]} : vector<2x128xf32> to vector<2x32xf32>
    %380 = vector.extract_strided_slice %377 {offsets = [0, 32], sizes = [2, 32], strides = [1, 1]} : vector<2x128xf32> to vector<2x32xf32>
    %381 = vector.extract_strided_slice %377 {offsets = [0, 96], sizes = [2, 32], strides = [1, 1]} : vector<2x128xf32> to vector<2x32xf32>
    %382 = vector.extract_strided_slice %378 {offsets = [0, 64], sizes = [2, 32], strides = [1, 1]} : vector<2x128xf32> to vector<2x32xf32>
    %383 = arith.mulf %380, %366 : vector<2x32xf32>
    %384 = arith.mulf %379, %382 : vector<2x32xf32>
    %385 = arith.addf %383, %384 : vector<2x32xf32>
    %386 = math.tanh %385 : vector<2x32xf32>
    %387 = arith.mulf %381, %386 : vector<2x32xf32>
    %388 = vector.extract_strided_slice %348 {offsets = [4, 0], sizes = [2, 128], strides = [1, 1]} : vector<16x128xf32> to vector<2x128xf32>
    %389 = arith.truncf %387 : vector<2x32xf32> to vector<2x32xbf16>
    %cst_108 = arith.constant dense<0.000000e+00> : vector<2x128xf32>
    %390 = tpu.matmul %389, %349, %cst_108 {dimension_numbers = #tpu.dot_dimension_numbers<[1], [0], [0], [1], [0, 0, 1, 1], [], []>} : vector<2x32xbf16>, vector<32x128xbf16>, vector<2x128xf32> -> vector<2x128xf32>
    %391 = arith.addf %388, %390 : vector<2x128xf32>
    %392 = arith.negf %391 : vector<2x128xf32>
    %393 = math.exp %392 : vector<2x128xf32>
    %cst_109 = arith.constant 1.000000e+00 : f32
    %394 = vector.broadcast %cst_109 : f32 to vector<2x128xf32>
    %395 = arith.addf %394, %393 : vector<2x128xf32>
    %396 = arith.divf %394, %395 : vector<2x128xf32>
    %397 = math.tanh %391 : vector<2x128xf32>
    %398 = vector.extract_strided_slice %396 {offsets = [0, 0], sizes = [2, 32], strides = [1, 1]} : vector<2x128xf32> to vector<2x32xf32>
    %399 = vector.extract_strided_slice %396 {offsets = [0, 32], sizes = [2, 32], strides = [1, 1]} : vector<2x128xf32> to vector<2x32xf32>
    %400 = vector.extract_strided_slice %396 {offsets = [0, 96], sizes = [2, 32], strides = [1, 1]} : vector<2x128xf32> to vector<2x32xf32>
    %401 = vector.extract_strided_slice %397 {offsets = [0, 64], sizes = [2, 32], strides = [1, 1]} : vector<2x128xf32> to vector<2x32xf32>
    %402 = arith.mulf %399, %385 : vector<2x32xf32>
    %403 = arith.mulf %398, %401 : vector<2x32xf32>
    %404 = arith.addf %402, %403 : vector<2x32xf32>
    %405 = math.tanh %404 : vector<2x32xf32>
    %406 = arith.mulf %400, %405 : vector<2x32xf32>
    %407 = vector.extract_strided_slice %348 {offsets = [6, 0], sizes = [2, 128], strides = [1, 1]} : vector<16x128xf32> to vector<2x128xf32>
    %408 = arith.truncf %406 : vector<2x32xf32> to vector<2x32xbf16>
    %cst_110 = arith.constant dense<0.000000e+00> : vector<2x128xf32>
    %409 = tpu.matmul %408, %349, %cst_110 {dimension_numbers = #tpu.dot_dimension_numbers<[1], [0], [0], [1], [0, 0, 1, 1], [], []>} : vector<2x32xbf16>, vector<32x128xbf16>, vector<2x128xf32> -> vector<2x128xf32>
    %410 = arith.addf %407, %409 : vector<2x128xf32>
    %411 = arith.negf %410 : vector<2x128xf32>
    %412 = math.exp %411 : vector<2x128xf32>
    %cst_111 = arith.constant 1.000000e+00 : f32
    %413 = vector.broadcast %cst_111 : f32 to vector<2x128xf32>
    %414 = arith.addf %413, %412 : vector<2x128xf32>
    %415 = arith.divf %413, %414 : vector<2x128xf32>
    %416 = math.tanh %410 : vector<2x128xf32>
    %417 = vector.extract_strided_slice %415 {offsets = [0, 0], sizes = [2, 32], strides = [1, 1]} : vector<2x128xf32> to vector<2x32xf32>
    %418 = vector.extract_strided_slice %415 {offsets = [0, 32], sizes = [2, 32], strides = [1, 1]} : vector<2x128xf32> to vector<2x32xf32>
    %419 = vector.extract_strided_slice %415 {offsets = [0, 96], sizes = [2, 32], strides = [1, 1]} : vector<2x128xf32> to vector<2x32xf32>
    %420 = vector.extract_strided_slice %416 {offsets = [0, 64], sizes = [2, 32], strides = [1, 1]} : vector<2x128xf32> to vector<2x32xf32>
    %421 = arith.mulf %418, %404 : vector<2x32xf32>
    %422 = arith.mulf %417, %420 : vector<2x32xf32>
    %423 = arith.addf %421, %422 : vector<2x32xf32>
    %424 = math.tanh %423 : vector<2x32xf32>
    %425 = arith.mulf %419, %424 : vector<2x32xf32>
    %426 = vector.extract_strided_slice %348 {offsets = [8, 0], sizes = [2, 128], strides = [1, 1]} : vector<16x128xf32> to vector<2x128xf32>
    %427 = arith.truncf %425 : vector<2x32xf32> to vector<2x32xbf16>
    %cst_112 = arith.constant dense<0.000000e+00> : vector<2x128xf32>
    %428 = tpu.matmul %427, %349, %cst_112 {dimension_numbers = #tpu.dot_dimension_numbers<[1], [0], [0], [1], [0, 0, 1, 1], [], []>} : vector<2x32xbf16>, vector<32x128xbf16>, vector<2x128xf32> -> vector<2x128xf32>
    %429 = arith.addf %426, %428 : vector<2x128xf32>
    %430 = arith.negf %429 : vector<2x128xf32>
    %431 = math.exp %430 : vector<2x128xf32>
    %cst_113 = arith.constant 1.000000e+00 : f32
    %432 = vector.broadcast %cst_113 : f32 to vector<2x128xf32>
    %433 = arith.addf %432, %431 : vector<2x128xf32>
    %434 = arith.divf %432, %433 : vector<2x128xf32>
    %435 = math.tanh %429 : vector<2x128xf32>
    %436 = vector.extract_strided_slice %434 {offsets = [0, 0], sizes = [2, 32], strides = [1, 1]} : vector<2x128xf32> to vector<2x32xf32>
    %437 = vector.extract_strided_slice %434 {offsets = [0, 32], sizes = [2, 32], strides = [1, 1]} : vector<2x128xf32> to vector<2x32xf32>
    %438 = vector.extract_strided_slice %434 {offsets = [0, 96], sizes = [2, 32], strides = [1, 1]} : vector<2x128xf32> to vector<2x32xf32>
    %439 = vector.extract_strided_slice %435 {offsets = [0, 64], sizes = [2, 32], strides = [1, 1]} : vector<2x128xf32> to vector<2x32xf32>
    %440 = arith.mulf %437, %423 : vector<2x32xf32>
    %441 = arith.mulf %436, %439 : vector<2x32xf32>
    %442 = arith.addf %440, %441 : vector<2x32xf32>
    %443 = math.tanh %442 : vector<2x32xf32>
    %444 = arith.mulf %438, %443 : vector<2x32xf32>
    %445 = vector.extract_strided_slice %348 {offsets = [10, 0], sizes = [2, 128], strides = [1, 1]} : vector<16x128xf32> to vector<2x128xf32>
    %446 = arith.truncf %444 : vector<2x32xf32> to vector<2x32xbf16>
    %cst_114 = arith.constant dense<0.000000e+00> : vector<2x128xf32>
    %447 = tpu.matmul %446, %349, %cst_114 {dimension_numbers = #tpu.dot_dimension_numbers<[1], [0], [0], [1], [0, 0, 1, 1], [], []>} : vector<2x32xbf16>, vector<32x128xbf16>, vector<2x128xf32> -> vector<2x128xf32>
    %448 = arith.addf %445, %447 : vector<2x128xf32>
    %449 = arith.negf %448 : vector<2x128xf32>
    %450 = math.exp %449 : vector<2x128xf32>
    %cst_115 = arith.constant 1.000000e+00 : f32
    %451 = vector.broadcast %cst_115 : f32 to vector<2x128xf32>
    %452 = arith.addf %451, %450 : vector<2x128xf32>
    %453 = arith.divf %451, %452 : vector<2x128xf32>
    %454 = math.tanh %448 : vector<2x128xf32>
    %455 = vector.extract_strided_slice %453 {offsets = [0, 0], sizes = [2, 32], strides = [1, 1]} : vector<2x128xf32> to vector<2x32xf32>
    %456 = vector.extract_strided_slice %453 {offsets = [0, 32], sizes = [2, 32], strides = [1, 1]} : vector<2x128xf32> to vector<2x32xf32>
    %457 = vector.extract_strided_slice %453 {offsets = [0, 96], sizes = [2, 32], strides = [1, 1]} : vector<2x128xf32> to vector<2x32xf32>
    %458 = vector.extract_strided_slice %454 {offsets = [0, 64], sizes = [2, 32], strides = [1, 1]} : vector<2x128xf32> to vector<2x32xf32>
    %459 = arith.mulf %456, %442 : vector<2x32xf32>
    %460 = arith.mulf %455, %458 : vector<2x32xf32>
    %461 = arith.addf %459, %460 : vector<2x32xf32>
    %462 = math.tanh %461 : vector<2x32xf32>
    %463 = arith.mulf %457, %462 : vector<2x32xf32>
    %464 = vector.extract_strided_slice %348 {offsets = [12, 0], sizes = [2, 128], strides = [1, 1]} : vector<16x128xf32> to vector<2x128xf32>
    %465 = arith.truncf %463 : vector<2x32xf32> to vector<2x32xbf16>
    %cst_116 = arith.constant dense<0.000000e+00> : vector<2x128xf32>
    %466 = tpu.matmul %465, %349, %cst_116 {dimension_numbers = #tpu.dot_dimension_numbers<[1], [0], [0], [1], [0, 0, 1, 1], [], []>} : vector<2x32xbf16>, vector<32x128xbf16>, vector<2x128xf32> -> vector<2x128xf32>
    %467 = arith.addf %464, %466 : vector<2x128xf32>
    %468 = arith.negf %467 : vector<2x128xf32>
    %469 = math.exp %468 : vector<2x128xf32>
    %cst_117 = arith.constant 1.000000e+00 : f32
    %470 = vector.broadcast %cst_117 : f32 to vector<2x128xf32>
    %471 = arith.addf %470, %469 : vector<2x128xf32>
    %472 = arith.divf %470, %471 : vector<2x128xf32>
    %473 = math.tanh %467 : vector<2x128xf32>
    %474 = vector.extract_strided_slice %472 {offsets = [0, 0], sizes = [2, 32], strides = [1, 1]} : vector<2x128xf32> to vector<2x32xf32>
    %475 = vector.extract_strided_slice %472 {offsets = [0, 32], sizes = [2, 32], strides = [1, 1]} : vector<2x128xf32> to vector<2x32xf32>
    %476 = vector.extract_strided_slice %472 {offsets = [0, 96], sizes = [2, 32], strides = [1, 1]} : vector<2x128xf32> to vector<2x32xf32>
    %477 = vector.extract_strided_slice %473 {offsets = [0, 64], sizes = [2, 32], strides = [1, 1]} : vector<2x128xf32> to vector<2x32xf32>
    %478 = arith.mulf %475, %461 : vector<2x32xf32>
    %479 = arith.mulf %474, %477 : vector<2x32xf32>
    %480 = arith.addf %478, %479 : vector<2x32xf32>
    %481 = math.tanh %480 : vector<2x32xf32>
    %482 = arith.mulf %476, %481 : vector<2x32xf32>
    %483 = vector.extract_strided_slice %348 {offsets = [14, 0], sizes = [2, 128], strides = [1, 1]} : vector<16x128xf32> to vector<2x128xf32>
    %484 = arith.truncf %482 : vector<2x32xf32> to vector<2x32xbf16>
    %cst_118 = arith.constant dense<0.000000e+00> : vector<2x128xf32>
    %485 = tpu.matmul %484, %349, %cst_118 {dimension_numbers = #tpu.dot_dimension_numbers<[1], [0], [0], [1], [0, 0, 1, 1], [], []>} : vector<2x32xbf16>, vector<32x128xbf16>, vector<2x128xf32> -> vector<2x128xf32>
    %486 = arith.addf %483, %485 : vector<2x128xf32>
    %487 = arith.negf %486 : vector<2x128xf32>
    %488 = math.exp %487 : vector<2x128xf32>
    %cst_119 = arith.constant 1.000000e+00 : f32
    %489 = vector.broadcast %cst_119 : f32 to vector<2x128xf32>
    %490 = arith.addf %489, %488 : vector<2x128xf32>
    %491 = arith.divf %489, %490 : vector<2x128xf32>
    %492 = math.tanh %486 : vector<2x128xf32>
    %493 = vector.extract_strided_slice %491 {offsets = [0, 0], sizes = [2, 32], strides = [1, 1]} : vector<2x128xf32> to vector<2x32xf32>
    %494 = vector.extract_strided_slice %491 {offsets = [0, 32], sizes = [2, 32], strides = [1, 1]} : vector<2x128xf32> to vector<2x32xf32>
    %495 = vector.extract_strided_slice %491 {offsets = [0, 96], sizes = [2, 32], strides = [1, 1]} : vector<2x128xf32> to vector<2x32xf32>
    %496 = vector.extract_strided_slice %492 {offsets = [0, 64], sizes = [2, 32], strides = [1, 1]} : vector<2x128xf32> to vector<2x32xf32>
    %497 = arith.mulf %494, %480 : vector<2x32xf32>
    %498 = arith.mulf %493, %496 : vector<2x32xf32>
    %499 = arith.addf %497, %498 : vector<2x32xf32>
    %500 = math.tanh %499 : vector<2x32xf32>
    %501 = arith.mulf %495, %500 : vector<2x32xf32>
    %502 = tpu.concatenate %501, %343 in 1 : vector<2x32xf32>, vector<2x32xf32> -> vector<2x64xf32>
    %cst_120 = arith.constant dense<0.000000e+00> : vector<2xf32>
    %503 = vector.multi_reduction <add>, %502, %cst_120 [1] : vector<2x64xf32> to vector<2xf32>
    %504 = vector.shape_cast %503 : vector<2xf32> to vector<2x1xf32>
    %cst_121 = arith.constant 6.400000e+01 : f32
    %505 = vector.broadcast %cst_121 : f32 to vector<2x1xf32>
    %506 = arith.divf %504, %505 : vector<2x1xf32>
    %507 = vector.broadcast %506 : vector<2x1xf32> to vector<2x64xf32>
    %508 = arith.subf %502, %507 : vector<2x64xf32>
    %509 = arith.mulf %508, %508 : vector<2x64xf32>
    %cst_122 = arith.constant dense<0.000000e+00> : vector<2xf32>
    %510 = vector.multi_reduction <add>, %509, %cst_122 [1] : vector<2x64xf32> to vector<2xf32>
    %511 = vector.shape_cast %510 : vector<2xf32> to vector<2x1xf32>
    %cst_123 = arith.constant 6.400000e+01 : f32
    %512 = vector.broadcast %cst_123 : f32 to vector<2x1xf32>
    %513 = arith.divf %511, %512 : vector<2x1xf32>
    %514 = vector.broadcast %506 : vector<2x1xf32> to vector<2x64xf32>
    %515 = arith.subf %502, %514 : vector<2x64xf32>
    %cst_124 = arith.constant 9.99999974E-6 : f32
    %516 = vector.broadcast %cst_124 : f32 to vector<2x1xf32>
    %517 = arith.addf %513, %516 : vector<2x1xf32>
    %518 = math.rsqrt %517 : vector<2x1xf32>
    %519 = vector.broadcast %518 : vector<2x1xf32> to vector<2x64xf32>
    %520 = arith.mulf %515, %519 : vector<2x64xf32>
    %c11 = arith.constant 11 : index
    %c0_125 = arith.constant 0 : index
    %521 = vector.load %arg2[%c11, %c0_125] : memref<24x256xf32, #tpu.memory_space<vmem>>, vector<1x64xf32>
    %522 = vector.broadcast %521 : vector<1x64xf32> to vector<2x64xf32>
    %523 = arith.mulf %520, %522 : vector<2x64xf32>
    %c12_126 = arith.constant 12 : index
    %c0_127 = arith.constant 0 : index
    %524 = vector.load %arg2[%c12_126, %c0_127] : memref<24x256xf32, #tpu.memory_space<vmem>>, vector<1x64xf32>
    %525 = vector.broadcast %524 : vector<1x64xf32> to vector<2x64xf32>
    %526 = arith.addf %523, %525 : vector<2x64xf32>
    %cst_128 = arith.constant 0.000000e+00 : f32
    %527 = vector.broadcast %cst_128 : f32 to vector<2x64xf32>
    %528 = arith.maximumf %526, %527 : vector<2x64xf32>
    %c144 = arith.constant 144 : index
    %c0_129 = arith.constant 0 : index
    %529 = vector.load %arg1[%c144, %c0_129] : memref<496x256xbf16, #tpu.memory_space<vmem>>, vector<64x32xbf16>
    %530 = arith.truncf %528 : vector<2x64xf32> to vector<2x64xbf16>
    %cst_130 = arith.constant dense<0.000000e+00> : vector<2x32xf32>
    %531 = tpu.matmul %530, %529, %cst_130 {dimension_numbers = #tpu.dot_dimension_numbers<[1], [0], [0], [1], [0, 0, 1, 1], [], []>} : vector<2x64xbf16>, vector<64x32xbf16>, vector<2x32xf32> -> vector<2x32xf32>
    %c13 = arith.constant 13 : index
    %c0_131 = arith.constant 0 : index
    %532 = vector.load %arg2[%c13, %c0_131] : memref<24x256xf32, #tpu.memory_space<vmem>>, vector<1x32xf32>
    %533 = vector.broadcast %532 : vector<1x32xf32> to vector<2x32xf32>
    %534 = arith.addf %531, %533 : vector<2x32xf32>
    %cst_132 = arith.constant dense<0.000000e+00> : vector<2xf32>
    %535 = vector.multi_reduction <add>, %534, %cst_132 [1] : vector<2x32xf32> to vector<2xf32>
    %536 = vector.shape_cast %535 : vector<2xf32> to vector<2x1xf32>
    %cst_133 = arith.constant 3.200000e+01 : f32
    %537 = vector.broadcast %cst_133 : f32 to vector<2x1xf32>
    %538 = arith.divf %536, %537 : vector<2x1xf32>
    %539 = vector.broadcast %538 : vector<2x1xf32> to vector<2x32xf32>
    %540 = arith.subf %534, %539 : vector<2x32xf32>
    %541 = arith.mulf %540, %540 : vector<2x32xf32>
    %cst_134 = arith.constant dense<0.000000e+00> : vector<2xf32>
    %542 = vector.multi_reduction <add>, %541, %cst_134 [1] : vector<2x32xf32> to vector<2xf32>
    %543 = vector.shape_cast %542 : vector<2xf32> to vector<2x1xf32>
    %cst_135 = arith.constant 3.200000e+01 : f32
    %544 = vector.broadcast %cst_135 : f32 to vector<2x1xf32>
    %545 = arith.divf %543, %544 : vector<2x1xf32>
    %546 = vector.broadcast %538 : vector<2x1xf32> to vector<2x32xf32>
    %547 = arith.subf %534, %546 : vector<2x32xf32>
    %cst_136 = arith.constant 9.99999974E-6 : f32
    %548 = vector.broadcast %cst_136 : f32 to vector<2x1xf32>
    %549 = arith.addf %545, %548 : vector<2x1xf32>
    %550 = math.rsqrt %549 : vector<2x1xf32>
    %551 = vector.broadcast %550 : vector<2x1xf32> to vector<2x32xf32>
    %552 = arith.mulf %547, %551 : vector<2x32xf32>
    %c14_137 = arith.constant 14 : index
    %c0_138 = arith.constant 0 : index
    %553 = vector.load %arg2[%c14_137, %c0_138] : memref<24x256xf32, #tpu.memory_space<vmem>>, vector<1x32xf32>
    %554 = vector.broadcast %553 : vector<1x32xf32> to vector<2x32xf32>
    %555 = arith.mulf %552, %554 : vector<2x32xf32>
    %c15 = arith.constant 15 : index
    %c0_139 = arith.constant 0 : index
    %556 = vector.load %arg2[%c15, %c0_139] : memref<24x256xf32, #tpu.memory_space<vmem>>, vector<1x32xf32>
    %557 = vector.broadcast %556 : vector<1x32xf32> to vector<2x32xf32>
    %558 = arith.addf %555, %557 : vector<2x32xf32>
    %cst_140 = arith.constant 0.000000e+00 : f32
    %559 = vector.broadcast %cst_140 : f32 to vector<2x32xf32>
    %560 = arith.maximumf %558, %559 : vector<2x32xf32>
    %c20 = arith.constant 20 : index
    %c0_141 = arith.constant 0 : index
    %561 = vector.load %arg2[%c20, %c0_141] : memref<24x256xf32, #tpu.memory_space<vmem>>, vector<1x32xf32>
    %562 = vector.broadcast %561 : vector<1x32xf32> to vector<2x32xf32>
    %563 = arith.mulf %560, %562 : vector<2x32xf32>
    %cst_142 = arith.constant dense<0.000000e+00> : vector<2xf32>
    %564 = vector.multi_reduction <add>, %563, %cst_142 [1] : vector<2x32xf32> to vector<2xf32>
    %565 = vector.shape_cast %564 : vector<2xf32> to vector<2x1xf32>
    %c16_143 = arith.constant 16 : index
    %c0_144 = arith.constant 0 : index
    %566 = vector.load %arg2[%c16_143, %c0_144] : memref<24x256xf32, #tpu.memory_space<vmem>>, vector<1x1xf32>
    %567 = vector.broadcast %566 : vector<1x1xf32> to vector<2x1xf32>
    %568 = arith.addf %565, %567 : vector<2x1xf32>
    %c0_145 = arith.constant 0 : index
    %c0_146 = arith.constant 0 : index
    %569 = vector.load %arg3[%c0_145, %c0_146] : memref<2x1xf32, #tpu.memory_space<vmem>>, vector<2x1xf32>
    tpu.vector_store %arg3[%c0_145, %c0_146], %568 {strides = array<i32>} : memref<2x1xf32, #tpu.memory_space<vmem>>, vector<2x1xf32>,
    return
  }
}

</mosaic_0001>

<llo_original>
// kernel: sepsis_pred.1
$region0: #{sepsis_pred.1}
  #allocation0 [shape = 'u32[]', space=smem, size = 0x4, offset = 0x4, fixed_abs, tag = 'smem constant byte address 0x4 - core index']
  #allocation1 [shape = 'u32[72,128]{1,0:T(1,128)}', space=vmem, size = 0x9000, scoped, tag = 'internal scratch']
  #allocation2 [shape = 'f32[16,64]{1,0:T(8,128)}', space=vmem, size = 0x2000, scoped, tag = 'scratch operand']
  %s0 = inlined_call_operand.vmem [shape: f32[16,16], index: 0, kind: input, shape index: {}]
  %s1 = inlined_call_operand.hbm [shape: bf16[496,256], index: 1, kind: input, shape index: {}]
  %s2 = inlined_call_operand.hbm [shape: f32[24,256], index: 2, kind: input, shape index: {}]
  %s3 = inlined_call_operand.vmem [shape: f32[2,1], index: 3, kind: output, shape index: {}]
  %s4 = sld [smem:[#allocation0]]
  $region30: #{sepsis_pred.1} parent=0
    _
  %s6 = ssub.s32 1, %s4
  %s7 = scalar_select 0, %s6, %s4
  $region1: #{sepsis_pred.1} parent=0
    #allocation3 [shape = 'u8[253952]{0}', space=vmem, size = 0x3e000, scoped, tag = 'input window, operand 1, single buffered']
    #allocation4 [shape = 's32[1]{0}', space=sflag, size = 0x4, scoped, tag = 'scoped memory for sepsis_pred.1']
    #allocation5 [shape = 'u8[24576]{0}', space=vmem, size = 0x6000, scoped, tag = 'input window, operand 2, single buffered']
    #allocation6 [shape = 's32[1]{0}', space=sflag, size = 0x4, scoped, tag = 'scoped memory for sepsis_pred.1']
    %8 = vsyncpa [#allocation4], 0
    %9 = vsyncpa [#allocation6], 0
    // Predicated region
    $region2: #{sepsis_pred.1} parent=1 // pred_check
      _
    $region3: #{sepsis_pred.1} parent=1 // pred_check_branch
      %11 = sbr.rel (0) target = $region5
    $region4: #{sepsis_pred.1} parent=1 // pred_region
      _
    $region5: #{sepsis_pred.1} parent=1 // pred_fallthru
      _
    // Predicated region
    $region6: #{sepsis_pred.1} parent=1 // pred_check
      _
    $region7: #{sepsis_pred.1} parent=1 // pred_check_branch
      %13 = sbr.rel (0) target = $region9
    $region8: #{sepsis_pred.1} parent=1 // pred_region
      %15 = vsyncadd [#allocation4], 0
      %s16 = sshll.u32 %s1, 4
      %s17 = int_to_ptr.hbm [resolvable:$true] %s16
      %s18 = sshll.u32 [#allocation3], 4
      %s19 = int_to_ptr.vmem [resolvable:$true] %s18
      %24 = dma.hbm_to_vmem [thread:$0]  %s17, 7936, %s19, [#allocation4], 128, 128, 8
    $region9: #{sepsis_pred.1} parent=1 // pred_fallthru
      _
    // Predicated region
    $region10: #{sepsis_pred.1} parent=1 // pred_check
      _
    $region11: #{sepsis_pred.1} parent=1 // pred_check_branch
      %26 = sbr.rel (0) target = $region13
    $region12: #{sepsis_pred.1} parent=1 // pred_region
      %28 = vsyncadd [#allocation6], 0
      %s29 = sshll.u32 %s2, 4
      %s30 = int_to_ptr.hbm [resolvable:$true] %s29
      %s31 = sshll.u32 [#allocation5], 4
      %s32 = int_to_ptr.vmem [resolvable:$true] %s31
      %37 = dma.hbm_to_vmem [thread:$0]  %s30, 768, %s32, [#allocation6], 256, 256, 16
    $region13: #{sepsis_pred.1} parent=1 // pred_fallthru
      _
    // Predicated region
    $region14: #{sepsis_pred.1} parent=1 // pred_check
      _
    $region15: #{sepsis_pred.1} parent=1 // pred_check_branch
      %39 = sbr.rel (0) target = $region17
    $region16: #{sepsis_pred.1} parent=1 // pred_region
      %41 = dma.done [#allocation4], 7936
    $region17: #{sepsis_pred.1} parent=1 // pred_fallthru
      _
    // Predicated region
    $region18: #{sepsis_pred.1} parent=1 // pred_check
      _
    $region19: #{sepsis_pred.1} parent=1 // pred_check_branch
      %43 = sbr.rel (0) target = $region21
    $region20: #{sepsis_pred.1} parent=1 // pred_region
      %45 = dma.done [#allocation6], 768
    $region21: #{sepsis_pred.1} parent=1 // pred_fallthru
      _
    %v47 = vld [vmem:[%s0] sm:$0xff]
    %v48 = vld [vmem:[%s0 + $0x8] sm:$0xff]
    %v49 = vld [vmem:[#allocation3] sm:$0xf]
    %v50 = vld [vmem:[#allocation3 + $0x8] sm:$0xf]
    %v51 = vpack.c.bf16 %v48, %v47
    %v52 = vld [vmem:[#allocation5] ss:$0 sm:$0xff]
    %v55 = vunpack.c.l.b16 %v49
    %v56 = vunpack.c.l.b16 %v50
    %v57 = vpack.c.b16 %v56, %v55
    %vm59 = vcmask 130048
    %v61 = vsel %vm59, %v51, 0
    %63 = vmatpush.bf16.msra.mxu0 0
    %64 = vmatpush.bf16.msra.mxu0 0
    %65 = vmatpush.bf16.msra.mxu0 0
    %66 = vmatpush.bf16.msra.mxu0 0
    %67 = vmatpush.bf16.msra.mxu0 0
    %68 = vmatpush.bf16.msra.mxu0 0
    %69 = vmatpush.bf16.msra.mxu0 0
    %70 = vmatpush.bf16.msra.mxu0 %v57
    %71 = vmatmul.bf16.gmra.mxu0 %v61
    %v72 = vpop.f32.mrf.mxu0
    %v73 = vadd.f32 %v52, %v72
    %v74 = vpop.f32.mrf.mxu0
    %v75 = vadd.f32 %v52, %v74
    %76 = vdwg.mxu0
    %vm77 = vcmask 261120
    %v78 = vsel %vm77, %v73, 0.0
    %79 = vadd.xlane.f32.xlu0 %v78
    %v80 = vpop.xlane.xlu0 %79
    %v81 = vsel %vm77, %v75, 0.0
    %82 = vadd.xlane.f32.xlu0 %v81
    %v83 = vpop.xlane.xlu0 %82
    %v84 = vrcp.pop 32.0
    %v85 = vmul.f32 32.0, %v84
    %v86 = vsub.f32 1.0, %v85
    %v87 = vmul.f32 %v84, %v86
    %v88 = vadd.f32 %v84, %v87
    %vm89 = vweird.f32 %v84
    %v90 = vsel %vm89, %v84, %v88
    %v91 = vmul.f32 %v80, %v90
    %v92 = vmul.f32 %v83, %v90
    %v93 = vsub.f32 %v73, %v91
    %v94 = vsub.f32 %v75, %v92
    %v95 = vmul.f32 %v93, %v93
    %v96 = vmul.f32 %v94, %v94
    %v97 = vsel %vm77, %v95, 0.0
    %98 = vadd.xlane.f32.xlu0 %v97
    %v99 = vpop.xlane.xlu0 %98
    %v100 = vsel %vm77, %v96, 0.0
    %101 = vadd.xlane.f32.xlu0 %v100
    %v102 = vpop.xlane.xlu0 %101
    %v103 = vmul.f32 %v99, %v90
    %v104 = vmul.f32 %v102, %v90
    %v105 = vadd.f32 %v103, 1e-12
    %v106 = vadd.f32 %v104, 1e-12
    %v107 = vrsqrt.pop %v105
    %v108 = vmul.f32 %v107, %v105
    %v109 = vmul.f32 %v108, %v107
    %v110 = vmul.f32 0.5, %v109
    %v111 = vsub.f32 1.5, %v110
    %v112 = vmul.f32 %v107, %v111
    %vm113 = vweird.f32 %v105
    %vm114 = vweird.f32 %v107
    %vm115 = vmor %vm113, %vm114
    %v116 = vsel %vm115, %v107, %v112
    %v117 = vrsqrt.pop %v106
    %v118 = vmul.f32 %v117, %v106
    %v119 = vmul.f32 %v118, %v117
    %v120 = vmul.f32 0.5, %v119
    %v121 = vsub.f32 1.5, %v120
    %v122 = vmul.f32 %v117, %v121
    %vm123 = vweird.f32 %v106
    %vm124 = vweird.f32 %v117
    %vm125 = vmor %vm123, %vm124
    %v126 = vsel %vm125, %v117, %v122
    %v127 = vmul.f32 %v93, %v116
    %v128 = vmul.f32 %v94, %v126
    %v129 = vld [vmem:[#allocation5 + $0x1] ss:$0 sm:$0xff]
    %v130 = vmul.f32 %v127, %v129
    %v131 = vmul.f32 %v128, %v129
    %v132 = vld [vmem:[#allocation5 + $0x2] ss:$0 sm:$0xff]
    %v133 = vadd.f32 %v130, %v132
    %v134 = vadd.f32 %v131, %v132
    %v135 = vld [vmem:[#allocation3 + $0x10] sm:$0xf]
    %v136 = vld [vmem:[#allocation3 + $0x18] sm:$0xf]
    %v137 = vld [vmem:[#allocation3 + $0x20] sm:$0xf]
    %v138 = vld [vmem:[#allocation3 + $0x28] sm:$0xf]
    %v139 = vpack.c.bf16 %v134, %v133
    %v140 = vld [vmem:[#allocation5 + $0x3] ss:$0 sm:$0xff]
    %v145 = vunpack.c.l.b16 %v135
    %v146 = vunpack.c.l.b16 %v136
    %v147 = vunpack.c.l.b16 %v137
    %v148 = vunpack.c.l.b16 %v138
    %v149 = vpack.c.b16 %v146, %v145
    %v150 = vpack.c.b16 %v148, %v147
    %v154 = vsel %vm77, %v139, 0
    %156 = vmatpush.bf16.msra.mxu0 0
    %157 = vmatpush.bf16.msra.mxu0 0
    %158 = vmatpush.bf16.msra.mxu0 0
    %159 = vmatpush.bf16.msra.mxu0 0
    %160 = vmatpush.bf16.msra.mxu0 0
    %161 = vmatpush.bf16.msra.mxu0 0
    %162 = vmatpush.bf16.msra.mxu0 %v150
    %163 = vmatpush.bf16.msra.mxu0 %v149
    %164 = vmatmul.bf16.gmra.mxu0 %v154
    %v165 = vpop.f32.mrf.mxu0
    %v166 = vadd.f32 %v140, %v165
    %v167 = vpop.f32.mrf.mxu0
    %v168 = vadd.f32 %v140, %v167
    %169 = vdwg.mxu0
    %v170 = vmax.f32 %v166, 0.0
    %v171 = vmax.f32 %v168, 0.0
    %v172 = vld [vmem:[#allocation3 + $0x30] sm:$0xf]
    %v173 = vld [vmem:[#allocation3 + $0x38] sm:$0xf]
    %v174 = vld [vmem:[#allocation3 + $0x40] sm:$0xf]
    %v175 = vld [vmem:[#allocation3 + $0x48] sm:$0xf]
    %v176 = vpack.c.bf16 %v171, %v170
    %v177 = vld [vmem:[#allocation5 + $0x4] ss:$0 sm:$0xff]
    %v182 = vunpack.c.l.b16 %v172
    %v183 = vunpack.c.l.b16 %v173
    %v184 = vunpack.c.l.b16 %v174
    %v185 = vunpack.c.l.b16 %v175
    %v186 = vpack.c.b16 %v183, %v182
    %v187 = vpack.c.b16 %v185, %v184
    %v191 = vsel %vm77, %v176, 0
    %193 = vmatpush.bf16.msra.mxu0 0
    %194 = vmatpush.bf16.msra.mxu0 0
    %195 = vmatpush.bf16.msra.mxu0 0
    %196 = vmatpush.bf16.msra.mxu0 0
    %197 = vmatpush.bf16.msra.mxu0 0
    %198 = vmatpush.bf16.msra.mxu0 0
    %199 = vmatpush.bf16.msra.mxu0 %v187
    %200 = vmatpush.bf16.msra.mxu0 %v186
    %201 = vmatmul.bf16.gmra.mxu0 %v191
    %v202 = vpop.f32.mrf.mxu0
    %v203 = vadd.f32 %v177, %v202
    %v204 = vpop.f32.mrf.mxu0
    %v205 = vadd.f32 %v177, %v204
    %206 = vdwg.mxu0
    %v207 = vadd.f32 %v133, %v203
    %v208 = vadd.f32 %v134, %v205
    %v209 = vsel %vm77, %v207, 0.0
    %210 = vadd.xlane.f32.xlu0 %v209
    %v211 = vpop.xlane.xlu0 %210
    %v212 = vsel %vm77, %v208, 0.0
    %213 = vadd.xlane.f32.xlu0 %v212
    %v214 = vpop.xlane.xlu0 %213
    %v215 = vmul.f32 %v211, %v90
    %v216 = vmul.f32 %v214, %v90
    %v217 = vsub.f32 %v207, %v215
    %v218 = vsub.f32 %v208, %v216
    %v219 = vmul.f32 %v217, %v217
    %v220 = vmul.f32 %v218, %v218
    %v221 = vsel %vm77, %v219, 0.0
    %222 = vadd.xlane.f32.xlu0 %v221
    %v223 = vpop.xlane.xlu0 %222
    %v224 = vsel %vm77, %v220, 0.0
    %225 = vadd.xlane.f32.xlu0 %v224
    %v226 = vpop.xlane.xlu0 %225
    %v227 = vmul.f32 %v223, %v90
    %v228 = vmul.f32 %v226, %v90
    %v229 = vadd.f32 %v227, 1e-12
    %v230 = vadd.f32 %v228, 1e-12
    %v231 = vrsqrt.pop %v229
    %v232 = vmul.f32 %v231, %v229
    %v233 = vmul.f32 %v232, %v231
    %v234 = vmul.f32 0.5, %v233
    %v235 = vsub.f32 1.5, %v234
    %v236 = vmul.f32 %v231, %v235
    %vm237 = vweird.f32 %v229
    %vm238 = vweird.f32 %v231
    %vm239 = vmor %vm237, %vm238
    %v240 = vsel %vm239, %v231, %v236
    %v241 = vrsqrt.pop %v230
    %v242 = vmul.f32 %v241, %v230
    %v243 = vmul.f32 %v242, %v241
    %v244 = vmul.f32 0.5, %v243
    %v245 = vsub.f32 1.5, %v244
    %v246 = vmul.f32 %v241, %v245
    %vm247 = vweird.f32 %v230
    %vm248 = vweird.f32 %v241
    %vm249 = vmor %vm247, %vm248
    %v250 = vsel %vm249, %v241, %v246
    %v251 = vmul.f32 %v217, %v240
    %v252 = vmul.f32 %v218, %v250
    %v253 = vld [vmem:[#allocation5 + $0x5] ss:$0 sm:$0xff]
    %v254 = vmul.f32 %v251, %v253
    %v255 = vmul.f32 %v252, %v253
    %v256 = vld [vmem:[#allocation5 + $0x6] ss:$0 sm:$0xff]
    %v257 = vadd.f32 %v254, %v256
    %v258 = vadd.f32 %v255, %v256
    %v259 = vld [vmem:[#allocation3 + $0x50] sm:$0xf]
    %v260 = vld [vmem:[#allocation3 + $0x58] sm:$0xf]
    %v261 = vld [vmem:[#allocation3 + $0x60] sm:$0xf]
    %v262 = vld [vmem:[#allocation3 + $0x68] sm:$0xf]
    %v263 = vpack.c.bf16 %v258, %v257
    %v264 = vld [vmem:[#allocation5 + $0x7] ss:$0 sm:$0xff]
    %v269 = vunpack.c.l.b16 %v259
    %v270 = vunpack.c.l.b16 %v260
    %v271 = vunpack.c.l.b16 %v261
    %v272 = vunpack.c.l.b16 %v262
    %v273 = vpack.c.b16 %v270, %v269
    %v274 = vpack.c.b16 %v272, %v271
    %v278 = vsel %vm77, %v263, 0
    %280 = vmatpush.bf16.msra.mxu0 0
    %281 = vmatpush.bf16.msra.mxu0 0
    %282 = vmatpush.bf16.msra.mxu0 0
    %283 = vmatpush.bf16.msra.mxu0 0
    %284 = vmatpush.bf16.msra.mxu0 0
    %285 = vmatpush.bf16.msra.mxu0 0
    %286 = vmatpush.bf16.msra.mxu0 %v274
    %287 = vmatpush.bf16.msra.mxu0 %v273
    %288 = vmatmul.bf16.gmra.mxu0 %v278
    %v289 = vpop.f32.mrf.mxu0
    %v290 = vadd.f32 %v264, %v289
    %v291 = vpop.f32.mrf.mxu0
    %v292 = vadd.f32 %v264, %v291
    %293 = vdwg.mxu0
    %v294 = vmax.f32 %v290, 0.0
    %v295 = vmax.f32 %v292, 0.0
    %v296 = vld [vmem:[#allocation3 + $0x70] sm:$0xf]
    %v297 = vld [vmem:[#allocation3 + $0x78] sm:$0xf]
    %v298 = vld [vmem:[#allocation3 + $0x80] sm:$0xf]
    %v299 = vld [vmem:[#allocation3 + $0x88] sm:$0xf]
    %v300 = vpack.c.bf16 %v295, %v294
    %v301 = vld [vmem:[#allocation5 + $0x10] ss:$0 sm:$0xff]
    %v306 = vunpack.c.l.b16 %v296
    %v307 = vunpack.c.l.b16 %v297
    %v308 = vunpack.c.l.b16 %v298
    %v309 = vunpack.c.l.b16 %v299
    %v310 = vpack.c.b16 %v307, %v306
    %v311 = vpack.c.b16 %v309, %v308
    %v315 = vsel %vm77, %v300, 0
    %317 = vmatpush.bf16.msra.mxu0 0
    %318 = vmatpush.bf16.msra.mxu0 0
    %319 = vmatpush.bf16.msra.mxu0 0
    %320 = vmatpush.bf16.msra.mxu0 0
    %321 = vmatpush.bf16.msra.mxu0 0
    %322 = vmatpush.bf16.msra.mxu0 0
    %323 = vmatpush.bf16.msra.mxu0 %v311
    %324 = vmatpush.bf16.msra.mxu0 %v310
    %325 = vmatmul.bf16.gmra.mxu0 %v315
    %v326 = vpop.f32.mrf.mxu0
    %v327 = vadd.f32 %v301, %v326
    %v328 = vpop.f32.mrf.mxu0
    %v329 = vadd.f32 %v301, %v328
    %330 = vdwg.mxu0
    %v331 = vadd.f32 %v257, %v327
    %v332 = vadd.f32 %v258, %v329
    %v333 = vsel %vm77, %v331, 0.0
    %334 = vadd.xlane.f32.xlu0 %v333
    %v335 = vpop.xlane.xlu0 %334
    %v336 = vsel %vm77, %v332, 0.0
    %337 = vadd.xlane.f32.xlu0 %v336
    %v338 = vpop.xlane.xlu0 %337
    %v339 = vmul.f32 %v335, %v90
    %v340 = vmul.f32 %v338, %v90
    %v341 = vsub.f32 %v331, %v339
    %v342 = vsub.f32 %v332, %v340
    %v343 = vmul.f32 %v341, %v341
    %v344 = vmul.f32 %v342, %v342
    %v345 = vsel %vm77, %v343, 0.0
    %346 = vadd.xlane.f32.xlu0 %v345
    %v347 = vpop.xlane.xlu0 %346
    %v348 = vsel %vm77, %v344, 0.0
    %349 = vadd.xlane.f32.xlu0 %v348
    %v350 = vpop.xlane.xlu0 %349
    %v351 = vmul.f32 %v347, %v90
    %v352 = vmul.f32 %v350, %v90
    %v353 = vadd.f32 %v351, 1e-12
    %v354 = vadd.f32 %v352, 1e-12
    %v355 = vrsqrt.pop %v353
    %v356 = vmul.f32 %v355, %v353
    %v357 = vmul.f32 %v356, %v355
    %v358 = vmul.f32 0.5, %v357
    %v359 = vsub.f32 1.5, %v358
    %v360 = vmul.f32 %v355, %v359
    %vm361 = vweird.f32 %v353
    %vm362 = vweird.f32 %v355
    %vm363 = vmor %vm361, %vm362
    %v364 = vsel %vm363, %v355, %v360
    %v365 = vrsqrt.pop %v354
    %v366 = vmul.f32 %v365, %v354
    %v367 = vmul.f32 %v366, %v365
    %v368 = vmul.f32 0.5, %v367
    %v369 = vsub.f32 1.5, %v368
    %v370 = vmul.f32 %v365, %v369
    %vm371 = vweird.f32 %v354
    %vm372 = vweird.f32 %v365
    %vm373 = vmor %vm371, %vm372
    %v374 = vsel %vm373, %v365, %v370
    %v375 = vmul.f32 %v341, %v364
    %v376 = vmul.f32 %v342, %v374
    %v377 = vld [vmem:[#allocation5 + $0x11] ss:$0 sm:$0xff]
    %v378 = vmul.f32 %v375, %v377
    %v379 = vmul.f32 %v376, %v377
    %v380 = vld [vmem:[#allocation5 + $0x12] ss:$0 sm:$0xff]
    %v381 = vadd.f32 %v378, %v380
    %v382 = vadd.f32 %v379, %v380
    %v383 = vpack.c.bf16 %v382, %v381
    %v384 = vld [vmem:[#allocation3 + $0xd0] sm:$0xff]
    %v385 = vld [vmem:[#allocation3 + $0xd8] sm:$0xff]
    %v386 = vld [vmem:[#allocation3 + $0xe0] sm:$0xff]
    %v387 = vld [vmem:[#allocation3 + $0xe8] sm:$0xff]
    %s388 = scalar_lea.vmem [#allocation5], 33
    %v389 = vld [vmem:[%s388] ss:$8 sm:$0x3]
    %v391 = vperm.slane %v389, 0
    %v392 = vperm.slane %v389, 1
    %v399 = vunpack.c.l.b16 %v384
    %v400 = vunpack.c.h.b16 %v384
    %v401 = vunpack.c.l.b16 %v385
    %v402 = vunpack.c.h.b16 %v385
    %v403 = vunpack.c.l.b16 %v386
    %v404 = vunpack.c.h.b16 %v386
    %v405 = vunpack.c.l.b16 %v387
    %v406 = vunpack.c.h.b16 %v387
    %v407 = vpack.c.b16 %v401, %v399
    %v408 = vpack.c.b16 %v402, %v400
    %v409 = vpack.c.b16 %v405, %v403
    %v410 = vpack.c.b16 %v406, %v404
    %v416 = vsel %vm77, %v383, 0
    %418 = vmatpush.bf16.msra.mxu0 0
    %419 = vmatpush.bf16.msra.mxu0 0
    %420 = vmatpush.bf16.msra.mxu0 0
    %421 = vmatpush.bf16.msra.mxu0 0
    %422 = vmatpush.bf16.msra.mxu0 0
    %423 = vmatpush.bf16.msra.mxu0 0
    %424 = vmatpush.bf16.msra.mxu0 %v409
    %425 = vmatpush.bf16.msra.mxu0 %v407
    %426 = vmatmul.bf16.gmra.mxu0 %v416
    %v427 = vpop.f32.mrf.mxu0
    %v428 = vadd.f32 %v391, %v427
    %v429 = vpop.f32.mrf.mxu0
    %v430 = vadd.f32 %v391, %v429
    %431 = vdwg.mxu0
    %432 = vmatpush.bf16.msra.mxu0 0
    %433 = vmatpush.bf16.msra.mxu0 0
    %434 = vmatpush.bf16.msra.mxu0 0
    %435 = vmatpush.bf16.msra.mxu0 0
    %436 = vmatpush.bf16.msra.mxu0 0
    %437 = vmatpush.bf16.msra.mxu0 0
    %438 = vmatpush.bf16.msra.mxu0 %v410
    %439 = vmatpush.bf16.msra.mxu0 %v408
    %440 = vmatmul.bf16.gmra.mxu0 %v416
    %v441 = vpop.f32.mrf.mxu0
    %v442 = vadd.f32 %v392, %v441
    %v443 = vpop.f32.mrf.mxu0
    %v444 = vadd.f32 %v392, %v443
    %445 = vdwg.mxu0
    %v446 = vld [vmem:[#allocation3 + $0xf0] sm:$0xff]
    %v447 = vld [vmem:[#allocation3 + $0xf8] sm:$0xff]
    %v448 = vld [vmem:[#allocation3 + $0x100] sm:$0xff]
    %v449 = vld [vmem:[#allocation3 + $0x108] sm:$0xff]
    %v454 = vunpack.c.l.b16 %v446
    %v455 = vunpack.c.h.b16 %v446
    %v456 = vunpack.c.l.b16 %v447
    %v457 = vunpack.c.h.b16 %v447
    %v458 = vunpack.c.l.b16 %v448
    %v459 = vunpack.c.h.b16 %v448
    %v460 = vunpack.c.l.b16 %v449
    %v461 = vunpack.c.h.b16 %v449
    %v462 = vpack.c.b16 %v456, %v454
    %v463 = vpack.c.b16 %v457, %v455
    %v464 = vpack.c.b16 %v460, %v458
    %v465 = vpack.c.b16 %v461, %v459
    %470 = vmatpush.bf16.msra.mxu0 0
    %471 = vmatpush.bf16.msra.mxu0 0
    %472 = vmatpush.bf16.msra.mxu0 0
    %473 = vmatpush.bf16.msra.mxu0 0
    %474 = vmatpush.bf16.msra.mxu0 0
    %475 = vmatpush.bf16.msra.mxu0 0
    %476 = vmatpush.bf16.msra.mxu0 %v464
    %477 = vmatpush.bf16.msra.mxu0 %v462
    %478 = vmatmul.bf16.gmra.mxu0 %v416
    %v479 = vpop.f32.mrf.mxu0
    %v480 = vadd.f32 0.0, %v479
    %v481 = vpop.f32.mrf.mxu0
    %v482 = vadd.f32 0.0, %v481
    %483 = vdwg.mxu0
    %484 = vmatpush.bf16.msra.mxu0 0
    %485 = vmatpush.bf16.msra.mxu0 0
    %486 = vmatpush.bf16.msra.mxu0 0
    %487 = vmatpush.bf16.msra.mxu0 0
    %488 = vmatpush.bf16.msra.mxu0 0
    %489 = vmatpush.bf16.msra.mxu0 0
    %490 = vmatpush.bf16.msra.mxu0 %v465
    %491 = vmatpush.bf16.msra.mxu0 %v463
    %492 = vmatmul.bf16.gmra.mxu0 %v416
    %v493 = vpop.f32.mrf.mxu0
    %v494 = vadd.f32 0.0, %v493
    %v495 = vpop.f32.mrf.mxu0
    %v496 = vadd.f32 0.0, %v495
    %497 = vdwg.mxu0
    %v498 = vld [vmem:[#allocation3 + $0x110] sm:$0xff]
    %v499 = vld [vmem:[#allocation3 + $0x118] sm:$0xff]
    %v500 = vld [vmem:[#allocation3 + $0x120] sm:$0xff]
    %v501 = vld [vmem:[#allocation3 + $0x128] sm:$0xff]
    %v502 = vld [vmem:[#allocation3 + $0x130] sm:$0xff]
    %v503 = vld [vmem:[#allocation3 + $0x138] sm:$0xff]
    %v504 = vld [vmem:[#allocation3 + $0x140] sm:$0xff]
    %v505 = vld [vmem:[#allocation3 + $0x148] sm:$0xff]
    %v508 = vrot.slane %v482, 6
    %v509 = vrot.slane %v496, 6
    %v512 = vadd.f32 %v428, %v508
    %v513 = vadd.f32 %v442, %v509
    %v522 = vunpack.c.l.b16 %v498
    %v523 = vunpack.c.h.b16 %v498
    %v524 = vunpack.c.l.b16 %v499
    %v525 = vunpack.c.h.b16 %v499
    %v526 = vunpack.c.l.b16 %v500
    %v527 = vunpack.c.h.b16 %v500
    %v528 = vunpack.c.l.b16 %v501
    %v529 = vunpack.c.h.b16 %v501
    %v530 = vunpack.c.l.b16 %v502
    %v531 = vunpack.c.h.b16 %v502
    %v532 = vunpack.c.l.b16 %v503
    %v533 = vunpack.c.h.b16 %v503
    %v534 = vunpack.c.l.b16 %v504
    %v535 = vunpack.c.h.b16 %v504
    %v536 = vunpack.c.l.b16 %v505
    %v537 = vunpack.c.h.b16 %v505
    %v538 = vpack.c.b16 %v524, %v522
    %v539 = vpack.c.b16 %v525, %v523
    %v540 = vpack.c.b16 %v528, %v526
    %v541 = vpack.c.b16 %v529, %v527
    %v542 = vpack.c.b16 %v532, %v530
    %v543 = vpack.c.b16 %v533, %v531
    %v544 = vpack.c.b16 %v536, %v534
    %v545 = vpack.c.b16 %v537, %v535
    %vm554 = vcmask 523264
    %v556 = vsel %vm554, 0, 0
    %558 = vmatpush.bf16.msra.mxu0 0
    %559 = vmatpush.bf16.msra.mxu0 0
    %560 = vmatpush.bf16.msra.mxu0 0
    %561 = vmatpush.bf16.msra.mxu0 0
    %562 = vmatpush.bf16.msra.mxu0 %v544
    %563 = vmatpush.bf16.msra.mxu0 %v542
    %564 = vmatpush.bf16.msra.mxu0 %v540
    %565 = vmatpush.bf16.msra.mxu0 %v538
    %566 = vmatmul.bf16.gmra.mxu0 %v556
    %v567 = vpop.f32.mrf.mxu0
    %v568 = vadd.f32 0.0, %v567
    %v569 = vpop.f32.mrf.mxu0
    %570 = vdwg.mxu0
    %571 = vmatpush.bf16.msra.mxu0 0
    %572 = vmatpush.bf16.msra.mxu0 0
    %573 = vmatpush.bf16.msra.mxu0 0
    %574 = vmatpush.bf16.msra.mxu0 0
    %575 = vmatpush.bf16.msra.mxu0 %v545
    %576 = vmatpush.bf16.msra.mxu0 %v543
    %577 = vmatpush.bf16.msra.mxu0 %v541
    %578 = vmatpush.bf16.msra.mxu0 %v539
    %579 = vmatmul.bf16.gmra.mxu0 %v556
    %v580 = vpop.f32.mrf.mxu0
    %v581 = vadd.f32 0.0, %v580
    %v582 = vpop.f32.mrf.mxu0
    %583 = vdwg.mxu0
    %v584 = vadd.f32 %v512, %v568
    %v585 = vadd.f32 %v513, %v581
    %v586 = vxor.u32 %v584, 2147483648
    %v587 = vxor.u32 %v585, 2147483648
    %v588 = vmul.f32 %v586, 1.442695
    %v589 = vpow.pop %v588
    %v590 = vmul.f32 %v587, 1.442695
    %v591 = vpow.pop %v590
    %v592 = vadd.f32 %v589, 1.0
    %v593 = vadd.f32 %v591, 1.0
    %v594 = vrcp.pop %v592
    %v595 = vmul.f32 %v592, %v594
    %v596 = vsub.f32 1.0, %v595
    %v597 = vmul.f32 %v594, %v596
    %v598 = vadd.f32 %v594, %v597
    %vm599 = vweird.f32 %v592
    %vm600 = vweird.f32 %v594
    %vm601 = vmor %vm599, %vm600
    %v602 = vsel %vm601, %v594, %v598
    %v603 = vand.u32 2147483647, %v592
    %vm604 = vcmp.eq.f32.partialorder %v603, 8.507059e+37
    %v605 = vand.u32 %v592, 2147483648
    %v606 = vor.u32 1.1754944e-38, %v605
    %v607 = vsel %vm604, %v606, %v602
    %v608 = vmul.f32 1.0, %v607
    %v609 = vrcp.pop %v593
    %v610 = vmul.f32 %v593, %v609
    %v611 = vsub.f32 1.0, %v610
    %v612 = vmul.f32 %v609, %v611
    %v613 = vadd.f32 %v609, %v612
    %vm614 = vweird.f32 %v593
    %vm615 = vweird.f32 %v609
    %vm616 = vmor %vm614, %vm615
    %v617 = vsel %vm616, %v609, %v613
    %v618 = vand.u32 2147483647, %v593
    %vm619 = vcmp.eq.f32.partialorder %v618, 8.507059e+37
    %v620 = vand.u32 %v593, 2147483648
    %v621 = vor.u32 1.1754944e-38, %v620
    %v622 = vsel %vm619, %v621, %v617
    %v623 = vmul.f32 1.0, %v622
    %v624 = vtanh.pop %v585
    %v625 = vmul.f32 %v608, 0.0
    %v626 = vmul.f32 %v608, %v624
    %628 = vrot.lane.b32.xlu0 %v626, 64
    %v629 = vpop.permute.xlu0 %628
    %v631 = vadd.f32 %v625, %v629
    %v632 = vtanh.pop %v631
    %v633 = vmul.f32 %v623, %v632
    %635 = vrot.lane.b32.xlu0 %v633, 64
    %v636 = vpop.permute.xlu0 %635
    %vm638 = vcmask 254976
    %639 = vst.msk [vmem:[#allocation2] sm:$0x3] %vm638, %v636
    %vm640 = vcmask 517376
    %641 = vst.msk [vmem:[#allocation2 + $0xe] sm:$0x3] %vm640, %v636
    %v642 = vrot.slane %v482, 2
    %v643 = vrot.slane %v496, 2
    %v646 = vadd.f32 %v428, %v642
    %v647 = vadd.f32 %v442, %v643
    %v648 = vpack.c.bf16 %v633, %v633
    %650 = vrot.lane.b32.xlu0 %v648, 64
    %v651 = vpop.permute.xlu0 %650
    %v653 = vsel %vm554, %v651, 0
    %655 = vmatpush.bf16.msra.mxu0 0
    %656 = vmatpush.bf16.msra.mxu0 0
    %657 = vmatpush.bf16.msra.mxu0 0
    %658 = vmatpush.bf16.msra.mxu0 0
    %659 = vmatpush.bf16.msra.mxu0 %v544
    %660 = vmatpush.bf16.msra.mxu0 %v542
    %661 = vmatpush.bf16.msra.mxu0 %v540
    %662 = vmatpush.bf16.msra.mxu0 %v538
    %663 = vmatmul.bf16.gmra.mxu0 %v653
    %v664 = vpop.f32.mrf.mxu0
    %v665 = vadd.f32 0.0, %v664
    %v666 = vpop.f32.mrf.mxu0
    %667 = vdwg.mxu0
    %668 = vmatpush.bf16.msra.mxu0 0
    %669 = vmatpush.bf16.msra.mxu0 0
    %670 = vmatpush.bf16.msra.mxu0 0
    %671 = vmatpush.bf16.msra.mxu0 0
    %672 = vmatpush.bf16.msra.mxu0 %v545
    %673 = vmatpush.bf16.msra.mxu0 %v543
    %674 = vmatpush.bf16.msra.mxu0 %v541
    %675 = vmatpush.bf16.msra.mxu0 %v539
    %676 = vmatmul.bf16.gmra.mxu0 %v653
    %v677 = vpop.f32.mrf.mxu0
    %v678 = vadd.f32 0.0, %v677
    %v679 = vpop.f32.mrf.mxu0
    %680 = vdwg.mxu0
    %v683 = vrot.slane %v665, 6
    %v684 = vrot.slane %v678, 6
    %v687 = vadd.f32 %v646, %v683
    %v688 = vadd.f32 %v647, %v684
    %v689 = vxor.u32 %v687, 2147483648
    %v690 = vxor.u32 %v688, 2147483648
    %v691 = vmul.f32 %v689, 1.442695
    %v692 = vpow.pop %v691
    %v693 = vmul.f32 %v690, 1.442695
    %v694 = vpow.pop %v693
    %v695 = vadd.f32 %v692, 1.0
    %v696 = vadd.f32 %v694, 1.0
    %v697 = vrcp.pop %v695
    %v698 = vmul.f32 %v695, %v697
    %v699 = vsub.f32 1.0, %v698
    %v700 = vmul.f32 %v697, %v699
    %v701 = vadd.f32 %v697, %v700
    %vm702 = vweird.f32 %v695
    %vm703 = vweird.f32 %v697
    %vm704 = vmor %vm702, %vm703
    %v705 = vsel %vm704, %v697, %v701
    %v706 = vand.u32 2147483647, %v695
    %vm707 = vcmp.eq.f32.partialorder %v706, 8.507059e+37
    %v708 = vand.u32 %v695, 2147483648
    %v709 = vor.u32 1.1754944e-38, %v708
    %v710 = vsel %vm707, %v709, %v705
    %v711 = vmul.f32 1.0, %v710
    %v712 = vrcp.pop %v696
    %v713 = vmul.f32 %v696, %v712
    %v714 = vsub.f32 1.0, %v713
    %v715 = vmul.f32 %v712, %v714
    %v716 = vadd.f32 %v712, %v715
    %vm717 = vweird.f32 %v696
    %vm718 = vweird.f32 %v712
    %vm719 = vmor %vm717, %vm718
    %v720 = vsel %vm719, %v712, %v716
    %v721 = vand.u32 2147483647, %v696
    %vm722 = vcmp.eq.f32.partialorder %v721, 8.507059e+37
    %v723 = vand.u32 %v696, 2147483648
    %v724 = vor.u32 1.1754944e-38, %v723
    %v725 = vsel %vm722, %v724, %v720
    %v726 = vmul.f32 1.0, %v725
    %v727 = vtanh.pop %v688
    %v729 = vrot.slane %v631, 6
    %v731 = vmul.f32 %v711, %v729
    %v732 = vmul.f32 %v711, %v727
    %734 = vrot.lane.b32.xlu0 %v732, 64
    %v735 = vpop.permute.xlu0 %734
    %v737 = vadd.f32 %v731, %v735
    %v738 = vtanh.pop %v737
    %v739 = vmul.f32 %v726, %v738
    %741 = vrot.lane.b32.xlu0 %v739, 64
    %v742 = vpop.permute.xlu0 %741
    %vm744 = vcmask 257026
    %745 = vst.msk [vmem:[#allocation2] sm:$0xc] %vm744, %v742
    %vm746 = vcmask 519426
    %747 = vst.msk [vmem:[#allocation2 + $0xa] sm:$0xc] %vm746, %v742
    %v748 = vpack.c.bf16 %v739, %v739
    %v750 = vrot.slane %v748, 1
    %751 = vrot.lane.b32.xlu0 %v750, 64
    %v752 = vpop.permute.xlu0 %751
    %v754 = vsel %vm554, %v752, 0
    %756 = vmatpush.bf16.msra.mxu0 0
    %757 = vmatpush.bf16.msra.mxu0 0
    %758 = vmatpush.bf16.msra.mxu0 0
    %759 = vmatpush.bf16.msra.mxu0 0
    %760 = vmatpush.bf16.msra.mxu0 %v544
    %761 = vmatpush.bf16.msra.mxu0 %v542
    %762 = vmatpush.bf16.msra.mxu0 %v540
    %763 = vmatpush.bf16.msra.mxu0 %v538
    %764 = vmatmul.bf16.gmra.mxu0 %v754
    %v765 = vpop.f32.mrf.mxu0
    %v766 = vadd.f32 0.0, %v765
    %v767 = vpop.f32.mrf.mxu0
    %768 = vdwg.mxu0
    %769 = vmatpush.bf16.msra.mxu0 0
    %770 = vmatpush.bf16.msra.mxu0 0
    %771 = vmatpush.bf16.msra.mxu0 0
    %772 = vmatpush.bf16.msra.mxu0 0
    %773 = vmatpush.bf16.msra.mxu0 %v545
    %774 = vmatpush.bf16.msra.mxu0 %v543
    %775 = vmatpush.bf16.msra.mxu0 %v541
    %776 = vmatpush.bf16.msra.mxu0 %v539
    %777 = vmatmul.bf16.gmra.mxu0 %v754
    %v778 = vpop.f32.mrf.mxu0
    %v779 = vadd.f32 0.0, %v778
    %v780 = vpop.f32.mrf.mxu0
    %781 = vdwg.mxu0
    %v784 = vrot.slane %v766, 4
    %v785 = vrot.slane %v779, 4
    %v788 = vadd.f32 %v512, %v784
    %v789 = vadd.f32 %v513, %v785
    %v790 = vxor.u32 %v788, 2147483648
    %v791 = vxor.u32 %v789, 2147483648
    %v792 = vmul.f32 %v790, 1.442695
    %v793 = vpow.pop %v792
    %v794 = vmul.f32 %v791, 1.442695
    %v795 = vpow.pop %v794
    %v796 = vadd.f32 %v793, 1.0
    %v797 = vadd.f32 %v795, 1.0
    %v798 = vrcp.pop %v796
    %v799 = vmul.f32 %v796, %v798
    %v800 = vsub.f32 1.0, %v799
    %v801 = vmul.f32 %v798, %v800
    %v802 = vadd.f32 %v798, %v801
    %vm803 = vweird.f32 %v796
    %vm804 = vweird.f32 %v798
    %vm805 = vmor %vm803, %vm804
    %v806 = vsel %vm805, %v798, %v802
    %v807 = vand.u32 2147483647, %v796
    %vm808 = vcmp.eq.f32.partialorder %v807, 8.507059e+37
    %v809 = vand.u32 %v796, 2147483648
    %v810 = vor.u32 1.1754944e-38, %v809
    %v811 = vsel %vm808, %v810, %v806
    %v812 = vmul.f32 1.0, %v811
    %v813 = vrcp.pop %v797
    %v814 = vmul.f32 %v797, %v813
    %v815 = vsub.f32 1.0, %v814
    %v816 = vmul.f32 %v813, %v815
    %v817 = vadd.f32 %v813, %v816
    %vm818 = vweird.f32 %v797
    %vm819 = vweird.f32 %v813
    %vm820 = vmor %vm818, %vm819
    %v821 = vsel %vm820, %v813, %v817
    %v822 = vand.u32 2147483647, %v797
    %vm823 = vcmp.eq.f32.partialorder %v822, 8.507059e+37
    %v824 = vand.u32 %v797, 2147483648
    %v825 = vor.u32 1.1754944e-38, %v824
    %v826 = vsel %vm823, %v825, %v821
    %v827 = vmul.f32 1.0, %v826
    %v828 = vtanh.pop %v789
    %v830 = vrot.slane %v737, 6
    %v832 = vmul.f32 %v812, %v830
    %v833 = vmul.f32 %v812, %v828
    %835 = vrot.lane.b32.xlu0 %v833, 64
    %v836 = vpop.permute.xlu0 %835
    %v838 = vadd.f32 %v832, %v836
    %v839 = vtanh.pop %v838
    %v840 = vmul.f32 %v827, %v839
    %842 = vrot.lane.b32.xlu0 %v840, 64
    %v843 = vpop.permute.xlu0 %842
    %vm845 = vcmask 259076
    %846 = vst.msk [vmem:[#allocation2] sm:$0x30] %vm845, %v843
    %vm847 = vcmask 521476
    %848 = vst.msk [vmem:[#allocation2 + $0x6] sm:$0x30] %vm847, %v843
    %v849 = vpack.c.bf16 %v840, %v840
    %v851 = vrot.slane %v849, 2
    %852 = vrot.lane.b32.xlu0 %v851, 64
    %v853 = vpop.permute.xlu0 %852
    %v855 = vsel %vm554, %v853, 0
    %857 = vmatpush.bf16.msra.mxu0 0
    %858 = vmatpush.bf16.msra.mxu0 0
    %859 = vmatpush.bf16.msra.mxu0 0
    %860 = vmatpush.bf16.msra.mxu0 0
    %861 = vmatpush.bf16.msra.mxu0 %v544
    %862 = vmatpush.bf16.msra.mxu0 %v542
    %863 = vmatpush.bf16.msra.mxu0 %v540
    %864 = vmatpush.bf16.msra.mxu0 %v538
    %865 = vmatmul.bf16.gmra.mxu0 %v855
    %v866 = vpop.f32.mrf.mxu0
    %v867 = vadd.f32 0.0, %v866
    %v868 = vpop.f32.mrf.mxu0
    %869 = vdwg.mxu0
    %870 = vmatpush.bf16.msra.mxu0 0
    %871 = vmatpush.bf16.msra.mxu0 0
    %872 = vmatpush.bf16.msra.mxu0 0
    %873 = vmatpush.bf16.msra.mxu0 0
    %874 = vmatpush.bf16.msra.mxu0 %v545
    %875 = vmatpush.bf16.msra.mxu0 %v543
    %876 = vmatpush.bf16.msra.mxu0 %v541
    %877 = vmatpush.bf16.msra.mxu0 %v539
    %878 = vmatmul.bf16.gmra.mxu0 %v855
    %v879 = vpop.f32.mrf.mxu0
    %v880 = vadd.f32 0.0, %v879
    %v881 = vpop.f32.mrf.mxu0
    %882 = vdwg.mxu0
    %v885 = vrot.slane %v867, 2
    %v886 = vrot.slane %v880, 2
    %v889 = vadd.f32 %v646, %v885
    %v890 = vadd.f32 %v647, %v886
    %v891 = vxor.u32 %v889, 2147483648
    %v892 = vxor.u32 %v890, 2147483648
    %v893 = vmul.f32 %v891, 1.442695
    %v894 = vpow.pop %v893
    %v895 = vmul.f32 %v892, 1.442695
    %v896 = vpow.pop %v895
    %v897 = vadd.f32 %v894, 1.0
    %v898 = vadd.f32 %v896, 1.0
    %v899 = vrcp.pop %v897
    %v900 = vmul.f32 %v897, %v899
    %v901 = vsub.f32 1.0, %v900
    %v902 = vmul.f32 %v899, %v901
    %v903 = vadd.f32 %v899, %v902
    %vm904 = vweird.f32 %v897
    %vm905 = vweird.f32 %v899
    %vm906 = vmor %vm904, %vm905
    %v907 = vsel %vm906, %v899, %v903
    %v908 = vand.u32 2147483647, %v897
    %vm909 = vcmp.eq.f32.partialorder %v908, 8.507059e+37
    %v910 = vand.u32 %v897, 2147483648
    %v911 = vor.u32 1.1754944e-38, %v910
    %v912 = vsel %vm909, %v911, %v907
    %v913 = vmul.f32 1.0, %v912
    %v914 = vrcp.pop %v898
    %v915 = vmul.f32 %v898, %v914
    %v916 = vsub.f32 1.0, %v915
    %v917 = vmul.f32 %v914, %v916
    %v918 = vadd.f32 %v914, %v917
    %vm919 = vweird.f32 %v898
    %vm920 = vweird.f32 %v914
    %vm921 = vmor %vm919, %vm920
    %v922 = vsel %vm921, %v914, %v918
    %v923 = vand.u32 2147483647, %v898
    %vm924 = vcmp.eq.f32.partialorder %v923, 8.507059e+37
    %v925 = vand.u32 %v898, 2147483648
    %v926 = vor.u32 1.1754944e-38, %v925
    %v927 = vsel %vm924, %v926, %v922
    %v928 = vmul.f32 1.0, %v927
    %v929 = vtanh.pop %v890
    %v931 = vrot.slane %v838, 6
    %v933 = vmul.f32 %v913, %v931
    %v934 = vmul.f32 %v913, %v929
    %936 = vrot.lane.b32.xlu0 %v934, 64
    %v937 = vpop.permute.xlu0 %936
    %v939 = vadd.f32 %v933, %v937
    %v940 = vtanh.pop %v939
    %v941 = vmul.f32 %v928, %v940
    %943 = vrot.lane.b32.xlu0 %v941, 64
    %v944 = vpop.permute.xlu0 %943
    %vm946 = vcmask 261126
    %947 = vst.msk [vmem:[#allocation2] sm:$0xc0] %vm946, %v944
    %vm948 = vcmask 523526
    %949 = vst.msk [vmem:[#allocation2 + $0x2] sm:$0xc0] %vm948, %v944
    %v952 = vrot.slane %v480, 6
    %v953 = vrot.slane %v494, 6
    %v956 = vadd.f32 %v430, %v952
    %v957 = vadd.f32 %v444, %v953
    %v958 = vpack.c.bf16 %v941, %v941
    %v960 = vrot.slane %v958, 3
    %961 = vrot.lane.b32.xlu0 %v960, 64
    %v962 = vpop.permute.xlu0 %961
    %v964 = vsel %vm554, %v962, 0
    %966 = vmatpush.bf16.msra.mxu0 0
    %967 = vmatpush.bf16.msra.mxu0 0
    %968 = vmatpush.bf16.msra.mxu0 0
    %969 = vmatpush.bf16.msra.mxu0 0
    %970 = vmatpush.bf16.msra.mxu0 %v544
    %971 = vmatpush.bf16.msra.mxu0 %v542
    %972 = vmatpush.bf16.msra.mxu0 %v540
    %973 = vmatpush.bf16.msra.mxu0 %v538
    %974 = vmatmul.bf16.gmra.mxu0 %v964
    %v975 = vpop.f32.mrf.mxu0
    %v976 = vadd.f32 0.0, %v975
    %v977 = vpop.f32.mrf.mxu0
    %978 = vdwg.mxu0
    %979 = vmatpush.bf16.msra.mxu0 0
    %980 = vmatpush.bf16.msra.mxu0 0
    %981 = vmatpush.bf16.msra.mxu0 0
    %982 = vmatpush.bf16.msra.mxu0 0
    %983 = vmatpush.bf16.msra.mxu0 %v545
    %984 = vmatpush.bf16.msra.mxu0 %v543
    %985 = vmatpush.bf16.msra.mxu0 %v541
    %986 = vmatpush.bf16.msra.mxu0 %v539
    %987 = vmatmul.bf16.gmra.mxu0 %v964
    %v988 = vpop.f32.mrf.mxu0
    %v989 = vadd.f32 0.0, %v988
    %v990 = vpop.f32.mrf.mxu0
    %991 = vdwg.mxu0
    %v992 = vadd.f32 %v956, %v976
    %v993 = vadd.f32 %v957, %v989
    %v994 = vxor.u32 %v992, 2147483648
    %v995 = vxor.u32 %v993, 2147483648
    %v996 = vmul.f32 %v994, 1.442695
    %v997 = vpow.pop %v996
    %v998 = vmul.f32 %v995, 1.442695
    %v999 = vpow.pop %v998
    %v1000 = vadd.f32 %v997, 1.0
    %v1001 = vadd.f32 %v999, 1.0
    %v1002 = vrcp.pop %v1000
    %v1003 = vmul.f32 %v1000, %v1002
    %v1004 = vsub.f32 1.0, %v1003
    %v1005 = vmul.f32 %v1002, %v1004
    %v1006 = vadd.f32 %v1002, %v1005
    %vm1007 = vweird.f32 %v1000
    %vm1008 = vweird.f32 %v1002
    %vm1009 = vmor %vm1007, %vm1008
    %v1010 = vsel %vm1009, %v1002, %v1006
    %v1011 = vand.u32 2147483647, %v1000
    %vm1012 = vcmp.eq.f32.partialorder %v1011, 8.507059e+37
    %v1013 = vand.u32 %v1000, 2147483648
    %v1014 = vor.u32 1.1754944e-38, %v1013
    %v1015 = vsel %vm1012, %v1014, %v1010
    %v1016 = vmul.f32 1.0, %v1015
    %v1017 = vrcp.pop %v1001
    %v1018 = vmul.f32 %v1001, %v1017
    %v1019 = vsub.f32 1.0, %v1018
    %v1020 = vmul.f32 %v1017, %v1019
    %v1021 = vadd.f32 %v1017, %v1020
    %vm1022 = vweird.f32 %v1001
    %vm1023 = vweird.f32 %v1017
    %vm1024 = vmor %vm1022, %vm1023
    %v1025 = vsel %vm1024, %v1017, %v1021
    %v1026 = vand.u32 2147483647, %v1001
    %vm1027 = vcmp.eq.f32.partialorder %v1026, 8.507059e+37
    %v1028 = vand.u32 %v1001, 2147483648
    %v1029 = vor.u32 1.1754944e-38, %v1028
    %v1030 = vsel %vm1027, %v1029, %v1025
    %v1031 = vmul.f32 1.0, %v1030
    %v1032 = vtanh.pop %v993
    %v1034 = vrot.slane %v939, 6
    %v1036 = vmul.f32 %v1016, %v1034
    %v1037 = vmul.f32 %v1016, %v1032
    %1039 = vrot.lane.b32.xlu0 %v1037, 64
    %v1040 = vpop.permute.xlu0 %1039
    %v1042 = vadd.f32 %v1036, %v1040
    %v1043 = vtanh.pop %v1042
    %v1044 = vmul.f32 %v1031, %v1043
    %1046 = vrot.lane.b32.xlu0 %v1044, 64
    %v1047 = vpop.permute.xlu0 %1046
    %1049 = vst.msk [vmem:[#allocation2 + $0x8] sm:$0x3] %vm638, %v1047
    %1050 = vst.msk [vmem:[#allocation2 + $0x6] sm:$0x3] %vm640, %v1047
    %v1051 = vrot.slane %v480, 2
    %v1052 = vrot.slane %v494, 2
    %v1055 = vadd.f32 %v430, %v1051
    %v1056 = vadd.f32 %v444, %v1052
    %v1057 = vpack.c.bf16 %v1044, %v1044
    %1059 = vrot.lane.b32.xlu0 %v1057, 64
    %v1060 = vpop.permute.xlu0 %1059
    %v1062 = vsel %vm554, %v1060, 0
    %1064 = vmatpush.bf16.msra.mxu0 0
    %1065 = vmatpush.bf16.msra.mxu0 0
    %1066 = vmatpush.bf16.msra.mxu0 0
    %1067 = vmatpush.bf16.msra.mxu0 0
    %1068 = vmatpush.bf16.msra.mxu0 %v544
    %1069 = vmatpush.bf16.msra.mxu0 %v542
    %1070 = vmatpush.bf16.msra.mxu0 %v540
    %1071 = vmatpush.bf16.msra.mxu0 %v538
    %1072 = vmatmul.bf16.gmra.mxu0 %v1062
    %v1073 = vpop.f32.mrf.mxu0
    %v1074 = vadd.f32 0.0, %v1073
    %v1075 = vpop.f32.mrf.mxu0
    %1076 = vdwg.mxu0
    %1077 = vmatpush.bf16.msra.mxu0 0
    %1078 = vmatpush.bf16.msra.mxu0 0
    %1079 = vmatpush.bf16.msra.mxu0 0
    %1080 = vmatpush.bf16.msra.mxu0 0
    %1081 = vmatpush.bf16.msra.mxu0 %v545
    %1082 = vmatpush.bf16.msra.mxu0 %v543
    %1083 = vmatpush.bf16.msra.mxu0 %v541
    %1084 = vmatpush.bf16.msra.mxu0 %v539
    %1085 = vmatmul.bf16.gmra.mxu0 %v1062
    %v1086 = vpop.f32.mrf.mxu0
    %v1087 = vadd.f32 0.0, %v1086
    %v1088 = vpop.f32.mrf.mxu0
    %1089 = vdwg.mxu0
    %v1092 = vrot.slane %v1074, 6
    %v1093 = vrot.slane %v1087, 6
    %v1096 = vadd.f32 %v1055, %v1092
    %v1097 = vadd.f32 %v1056, %v1093
    %v1098 = vxor.u32 %v1096, 2147483648
    %v1099 = vxor.u32 %v1097, 2147483648
    %v1100 = vmul.f32 %v1098, 1.442695
    %v1101 = vpow.pop %v1100
    %v1102 = vmul.f32 %v1099, 1.442695
    %v1103 = vpow.pop %v1102
    %v1104 = vadd.f32 %v1101, 1.0
    %v1105 = vadd.f32 %v1103, 1.0
    %v1106 = vrcp.pop %v1104
    %v1107 = vmul.f32 %v1104, %v1106
    %v1108 = vsub.f32 1.0, %v1107
    %v1109 = vmul.f32 %v1106, %v1108
    %v1110 = vadd.f32 %v1106, %v1109
    %vm1111 = vweird.f32 %v1104
    %vm1112 = vweird.f32 %v1106
    %vm1113 = vmor %vm1111, %vm1112
    %v1114 = vsel %vm1113, %v1106, %v1110
    %v1115 = vand.u32 2147483647, %v1104
    %vm1116 = vcmp.eq.f32.partialorder %v1115, 8.507059e+37
    %v1117 = vand.u32 %v1104, 2147483648
    %v1118 = vor.u32 1.1754944e-38, %v1117
    %v1119 = vsel %vm1116, %v1118, %v1114
    %v1120 = vmul.f32 1.0, %v1119
    %v1121 = vrcp.pop %v1105
    %v1122 = vmul.f32 %v1105, %v1121
    %v1123 = vsub.f32 1.0, %v1122
    %v1124 = vmul.f32 %v1121, %v1123
    %v1125 = vadd.f32 %v1121, %v1124
    %vm1126 = vweird.f32 %v1105
    %vm1127 = vweird.f32 %v1121
    %vm1128 = vmor %vm1126, %vm1127
    %v1129 = vsel %vm1128, %v1121, %v1125
    %v1130 = vand.u32 2147483647, %v1105
    %vm1131 = vcmp.eq.f32.partialorder %v1130, 8.507059e+37
    %v1132 = vand.u32 %v1105, 2147483648
    %v1133 = vor.u32 1.1754944e-38, %v1132
    %v1134 = vsel %vm1131, %v1133, %v1129
    %v1135 = vmul.f32 1.0, %v1134
    %v1136 = vtanh.pop %v1097
    %v1138 = vrot.slane %v1042, 6
    %v1140 = vmul.f32 %v1120, %v1138
    %v1141 = vmul.f32 %v1120, %v1136
    %1143 = vrot.lane.b32.xlu0 %v1141, 64
    %v1144 = vpop.permute.xlu0 %1143
    %v1146 = vadd.f32 %v1140, %v1144
    %v1147 = vtanh.pop %v1146
    %v1148 = vmul.f32 %v1135, %v1147
    %1150 = vrot.lane.b32.xlu0 %v1148, 64
    %v1151 = vpop.permute.xlu0 %1150
    %1153 = vst.msk [vmem:[#allocation2 + $0x8] sm:$0xc] %vm744, %v1151
    %1154 = vst.msk [vmem:[#allocation2 + $0x2] sm:$0xc] %vm746, %v1151
    %v1155 = vpack.c.bf16 %v1148, %v1148
    %v1157 = vrot.slane %v1155, 1
    %1158 = vrot.lane.b32.xlu0 %v1157, 64
    %v1159 = vpop.permute.xlu0 %1158
    %v1161 = vsel %vm554, %v1159, 0
    %1163 = vmatpush.bf16.msra.mxu0 0
    %1164 = vmatpush.bf16.msra.mxu0 0
    %1165 = vmatpush.bf16.msra.mxu0 0
    %1166 = vmatpush.bf16.msra.mxu0 0
    %1167 = vmatpush.bf16.msra.mxu0 %v544
    %1168 = vmatpush.bf16.msra.mxu0 %v542
    %1169 = vmatpush.bf16.msra.mxu0 %v540
    %1170 = vmatpush.bf16.msra.mxu0 %v538
    %1171 = vmatmul.bf16.gmra.mxu0 %v1161
    %v1172 = vpop.f32.mrf.mxu0
    %v1173 = vadd.f32 0.0, %v1172
    %v1174 = vpop.f32.mrf.mxu0
    %1175 = vdwg.mxu0
    %1176 = vmatpush.bf16.msra.mxu0 0
    %1177 = vmatpush.bf16.msra.mxu0 0
    %1178 = vmatpush.bf16.msra.mxu0 0
    %1179 = vmatpush.bf16.msra.mxu0 0
    %1180 = vmatpush.bf16.msra.mxu0 %v545
    %1181 = vmatpush.bf16.msra.mxu0 %v543
    %1182 = vmatpush.bf16.msra.mxu0 %v541
    %1183 = vmatpush.bf16.msra.mxu0 %v539
    %1184 = vmatmul.bf16.gmra.mxu0 %v1161
    %v1185 = vpop.f32.mrf.mxu0
    %v1186 = vadd.f32 0.0, %v1185
    %v1187 = vpop.f32.mrf.mxu0
    %1188 = vdwg.mxu0
    %v1191 = vrot.slane %v1173, 4
    %v1192 = vrot.slane %v1186, 4
    %v1195 = vadd.f32 %v956, %v1191
    %v1196 = vadd.f32 %v957, %v1192
    %v1197 = vxor.u32 %v1195, 2147483648
    %v1198 = vxor.u32 %v1196, 2147483648
    %v1199 = vmul.f32 %v1197, 1.442695
    %v1200 = vpow.pop %v1199
    %v1201 = vmul.f32 %v1198, 1.442695
    %v1202 = vpow.pop %v1201
    %v1203 = vadd.f32 %v1200, 1.0
    %v1204 = vadd.f32 %v1202, 1.0
    %v1205 = vrcp.pop %v1203
    %v1206 = vmul.f32 %v1203, %v1205
    %v1207 = vsub.f32 1.0, %v1206
    %v1208 = vmul.f32 %v1205, %v1207
    %v1209 = vadd.f32 %v1205, %v1208
    %vm1210 = vweird.f32 %v1203
    %vm1211 = vweird.f32 %v1205
    %vm1212 = vmor %vm1210, %vm1211
    %v1213 = vsel %vm1212, %v1205, %v1209
    %v1214 = vand.u32 2147483647, %v1203
    %vm1215 = vcmp.eq.f32.partialorder %v1214, 8.507059e+37
    %v1216 = vand.u32 %v1203, 2147483648
    %v1217 = vor.u32 1.1754944e-38, %v1216
    %v1218 = vsel %vm1215, %v1217, %v1213
    %v1219 = vmul.f32 1.0, %v1218
    %v1220 = vrcp.pop %v1204
    %v1221 = vmul.f32 %v1204, %v1220
    %v1222 = vsub.f32 1.0, %v1221
    %v1223 = vmul.f32 %v1220, %v1222
    %v1224 = vadd.f32 %v1220, %v1223
    %vm1225 = vweird.f32 %v1204
    %vm1226 = vweird.f32 %v1220
    %vm1227 = vmor %vm1225, %vm1226
    %v1228 = vsel %vm1227, %v1220, %v1224
    %v1229 = vand.u32 2147483647, %v1204
    %vm1230 = vcmp.eq.f32.partialorder %v1229, 8.507059e+37
    %v1231 = vand.u32 %v1204, 2147483648
    %v1232 = vor.u32 1.1754944e-38, %v1231
    %v1233 = vsel %vm1230, %v1232, %v1228
    %v1234 = vmul.f32 1.0, %v1233
    %v1235 = vtanh.pop %v1196
    %v1237 = vrot.slane %v1146, 6
    %v1239 = vmul.f32 %v1219, %v1237
    %v1240 = vmul.f32 %v1219, %v1235
    %1242 = vrot.lane.b32.xlu0 %v1240, 64
    %v1243 = vpop.permute.xlu0 %1242
    %v1245 = vadd.f32 %v1239, %v1243
    %v1246 = vtanh.pop %v1245
    %v1247 = vmul.f32 %v1234, %v1246
    %1249 = vrot.lane.b32.xlu0 %v1247, 64
    %v1250 = vpop.permute.xlu0 %1249
    %1252 = vst.msk [vmem:[#allocation2 + $0x8] sm:$0x30] %vm845, %v1250
    %1253 = vst.msk [vmem:[#allocation2 - $0x2] sm:$0x30] %vm847, %v1250
    %v1254 = vpack.c.bf16 %v1247, %v1247
    %v1256 = vrot.slane %v1254, 2
    %1257 = vrot.lane.b32.xlu0 %v1256, 64
    %v1258 = vpop.permute.xlu0 %1257
    %v1260 = vsel %vm554, %v1258, 0
    %1262 = vmatpush.bf16.msra.mxu0 0
    %1263 = vmatpush.bf16.msra.mxu0 0
    %1264 = vmatpush.bf16.msra.mxu0 0
    %1265 = vmatpush.bf16.msra.mxu0 0
    %1266 = vmatpush.bf16.msra.mxu0 %v544
    %1267 = vmatpush.bf16.msra.mxu0 %v542
    %1268 = vmatpush.bf16.msra.mxu0 %v540
    %1269 = vmatpush.bf16.msra.mxu0 %v538
    %1270 = vmatmul.bf16.gmra.mxu0 %v1260
    %v1271 = vpop.f32.mrf.mxu0
    %v1272 = vadd.f32 0.0, %v1271
    %v1273 = vpop.f32.mrf.mxu0
    %1274 = vdwg.mxu0
    %1275 = vmatpush.bf16.msra.mxu0 0
    %1276 = vmatpush.bf16.msra.mxu0 0
    %1277 = vmatpush.bf16.msra.mxu0 0
    %1278 = vmatpush.bf16.msra.mxu0 0
    %1279 = vmatpush.bf16.msra.mxu0 %v545
    %1280 = vmatpush.bf16.msra.mxu0 %v543
    %1281 = vmatpush.bf16.msra.mxu0 %v541
    %1282 = vmatpush.bf16.msra.mxu0 %v539
    %1283 = vmatmul.bf16.gmra.mxu0 %v1260
    %v1284 = vpop.f32.mrf.mxu0
    %v1285 = vadd.f32 0.0, %v1284
    %v1286 = vpop.f32.mrf.mxu0
    %1287 = vdwg.mxu0
    %v1290 = vrot.slane %v1272, 2
    %v1291 = vrot.slane %v1285, 2
    %v1294 = vadd.f32 %v1055, %v1290
    %v1295 = vadd.f32 %v1056, %v1291
    %v1296 = vxor.u32 %v1294, 2147483648
    %v1297 = vxor.u32 %v1295, 2147483648
    %v1298 = vmul.f32 %v1296, 1.442695
    %v1299 = vpow.pop %v1298
    %v1300 = vmul.f32 %v1297, 1.442695
    %v1301 = vpow.pop %v1300
    %v1302 = vadd.f32 %v1299, 1.0
    %v1303 = vadd.f32 %v1301, 1.0
    %v1304 = vrcp.pop %v1302
    %v1305 = vmul.f32 %v1302, %v1304
    %v1306 = vsub.f32 1.0, %v1305
    %v1307 = vmul.f32 %v1304, %v1306
    %v1308 = vadd.f32 %v1304, %v1307
    %vm1309 = vweird.f32 %v1302
    %vm1310 = vweird.f32 %v1304
    %vm1311 = vmor %vm1309, %vm1310
    %v1312 = vsel %vm1311, %v1304, %v1308
    %v1313 = vand.u32 2147483647, %v1302
    %vm1314 = vcmp.eq.f32.partialorder %v1313, 8.507059e+37
    %v1315 = vand.u32 %v1302, 2147483648
    %v1316 = vor.u32 1.1754944e-38, %v1315
    %v1317 = vsel %vm1314, %v1316, %v1312
    %v1318 = vmul.f32 1.0, %v1317
    %v1319 = vrcp.pop %v1303
    %v1320 = vmul.f32 %v1303, %v1319
    %v1321 = vsub.f32 1.0, %v1320
    %v1322 = vmul.f32 %v1319, %v1321
    %v1323 = vadd.f32 %v1319, %v1322
    %vm1324 = vweird.f32 %v1303
    %vm1325 = vweird.f32 %v1319
    %vm1326 = vmor %vm1324, %vm1325
    %v1327 = vsel %vm1326, %v1319, %v1323
    %v1328 = vand.u32 2147483647, %v1303
    %vm1329 = vcmp.eq.f32.partialorder %v1328, 8.507059e+37
    %v1330 = vand.u32 %v1303, 2147483648
    %v1331 = vor.u32 1.1754944e-38, %v1330
    %v1332 = vsel %vm1329, %v1331, %v1327
    %v1333 = vmul.f32 1.0, %v1332
    %v1334 = vtanh.pop %v1295
    %v1336 = vrot.slane %v1245, 6
    %v1338 = vmul.f32 %v1318, %v1336
    %v1339 = vmul.f32 %v1318, %v1334
    %1341 = vrot.lane.b32.xlu0 %v1339, 64
    %v1342 = vpop.permute.xlu0 %1341
    %v1344 = vadd.f32 %v1338, %v1342
    %v1345 = vtanh.pop %v1344
    %v1346 = vmul.f32 %v1333, %v1345
    %1348 = vrot.lane.b32.xlu0 %v1346, 64
    %v1349 = vpop.permute.xlu0 %1348
    %1351 = vst.msk [vmem:[#allocation2 + $0x8] sm:$0xc0] %vm946, %v1349
    %1352 = vst.msk [vmem:[#allocation2 - $0x6] sm:$0xc0] %vm948, %v1349
    %v1353 = vld [vmem:[#allocation2] sm:$0xff]
    %v1354 = vld [vmem:[#allocation2 + $0x8] sm:$0xff]
    %v1355 = vpack.c.bf16 %v1353, %v1353
    %v1356 = vpack.c.bf16 %v1354, %v1354
    %v1357 = vld [vmem:[#allocation3 + $0x190] sm:$0xf]
    %v1358 = vld [vmem:[#allocation3 + $0x198] sm:$0xf]
    %v1359 = vld [vmem:[#allocation3 + $0x1a0] sm:$0xf]
    %v1360 = vld [vmem:[#allocation3 + $0x1a8] sm:$0xf]
    %v1361 = vld [vmem:[#allocation3 + $0x1b0] sm:$0xf]
    %v1362 = vld [vmem:[#allocation3 + $0x1b8] sm:$0xf]
    %v1363 = vld [vmem:[#allocation3 + $0x1c0] sm:$0xf]
    %v1364 = vld [vmem:[#allocation3 + $0x1c8] sm:$0xf]
    %v1365 = vld [vmem:[#allocation5 + $0x23] ss:$0 sm:$0xff]
    %v1367 = vunpack.c.l.b16 %v1356
    %v1368 = vpack.c.b16 %v1367, %v1367
    %v1369 = vrot.slane %v1368, 3
    %v1378 = vunpack.c.l.b16 %v1357
    %v1379 = vunpack.c.l.b16 %v1358
    %v1380 = vunpack.c.l.b16 %v1359
    %v1381 = vunpack.c.l.b16 %v1360
    %v1382 = vunpack.c.l.b16 %v1361
    %v1383 = vunpack.c.l.b16 %v1362
    %v1384 = vunpack.c.l.b16 %v1363
    %v1385 = vunpack.c.l.b16 %v1364
    %v1386 = vpack.c.b16 %v1379, %v1378
    %v1387 = vpack.c.b16 %v1381, %v1380
    %v1388 = vpack.c.b16 %v1383, %v1382
    %v1389 = vpack.c.b16 %v1385, %v1384
    %v1395 = vsel %vm554, %v1369, 0
    %1397 = vmatpush.bf16.msra.mxu0 0
    %1398 = vmatpush.bf16.msra.mxu0 0
    %1399 = vmatpush.bf16.msra.mxu0 0
    %1400 = vmatpush.bf16.msra.mxu0 0
    %1401 = vmatpush.bf16.msra.mxu0 %v1389
    %1402 = vmatpush.bf16.msra.mxu0 %v1388
    %1403 = vmatpush.bf16.msra.mxu0 %v1387
    %1404 = vmatpush.bf16.msra.mxu0 %v1386
    %1405 = vmatmul.bf16.gmra.mxu0 %v1395
    %v1406 = vpop.f32.mrf.mxu0
    %v1407 = vadd.f32 %v1365, %v1406
    %v1408 = vpop.f32.mrf.mxu0
    %1409 = vdwg.mxu0
    %v1410 = vxor.u32 %v1407, 2147483648
    %v1411 = vmul.f32 %v1410, 1.442695
    %v1412 = vpow.pop %v1411
    %v1413 = vadd.f32 %v1412, 1.0
    %v1414 = vrcp.pop %v1413
    %v1415 = vmul.f32 %v1413, %v1414
    %v1416 = vsub.f32 1.0, %v1415
    %v1417 = vmul.f32 %v1414, %v1416
    %v1418 = vadd.f32 %v1414, %v1417
    %vm1419 = vweird.f32 %v1413
    %vm1420 = vweird.f32 %v1414
    %vm1421 = vmor %vm1419, %vm1420
    %v1422 = vsel %vm1421, %v1414, %v1418
    %v1423 = vand.u32 2147483647, %v1413
    %vm1424 = vcmp.eq.f32.partialorder %v1423, 8.507059e+37
    %v1425 = vand.u32 %v1413, 2147483648
    %v1426 = vor.u32 1.1754944e-38, %v1425
    %v1427 = vsel %vm1424, %v1426, %v1422
    %v1428 = vmul.f32 1.0, %v1427
    %v1429 = vtanh.pop %v1407
    %v1430 = vmul.f32 %v1428, 0.0
    %1432 = vrot.lane.b32.xlu0 %v1429, 64
    %v1433 = vpop.permute.xlu0 %1432
    %v1435 = vmul.f32 %v1428, %v1433
    %1437 = vrot.lane.b32.xlu0 %v1435, 32
    %v1438 = vpop.permute.xlu0 %1437
    %v1440 = vadd.f32 %v1430, %v1438
    %v1441 = vtanh.pop %v1440
    %1443 = vrot.lane.b32.xlu0 %v1441, 64
    %v1444 = vpop.permute.xlu0 %1443
    %v1446 = vmul.f32 %v1428, %v1444
    %v1447 = vld [vmem:[#allocation3 + $0x150] sm:$0xf]
    %v1448 = vld [vmem:[#allocation3 + $0x158] sm:$0xf]
    %v1449 = vld [vmem:[#allocation3 + $0x160] sm:$0xf]
    %v1450 = vld [vmem:[#allocation3 + $0x168] sm:$0xf]
    %v1451 = vld [vmem:[#allocation3 + $0x170] sm:$0xf]
    %v1452 = vld [vmem:[#allocation3 + $0x178] sm:$0xf]
    %v1453 = vld [vmem:[#allocation3 + $0x180] sm:$0xf]
    %v1454 = vld [vmem:[#allocation3 + $0x188] sm:$0xf]
    %v1455 = vld [vmem:[#allocation5 + $0x22] ss:$0 sm:$0xff]
    %v1457 = vunpack.c.l.b16 %v1355
    %v1458 = vpack.c.b16 %v1367, %v1457
    %v1467 = vunpack.c.l.b16 %v1447
    %v1468 = vunpack.c.l.b16 %v1448
    %v1469 = vunpack.c.l.b16 %v1449
    %v1470 = vunpack.c.l.b16 %v1450
    %v1471 = vunpack.c.l.b16 %v1451
    %v1472 = vunpack.c.l.b16 %v1452
    %v1473 = vunpack.c.l.b16 %v1453
    %v1474 = vunpack.c.l.b16 %v1454
    %v1475 = vpack.c.b16 %v1468, %v1467
    %v1476 = vpack.c.b16 %v1470, %v1469
    %v1477 = vpack.c.b16 %v1472, %v1471
    %v1478 = vpack.c.b16 %v1474, %v1473
    %v1484 = vsel %vm554, %v1458, 0
    %1486 = vmatpush.bf16.msra.mxu0 0
    %1487 = vmatpush.bf16.msra.mxu0 0
    %1488 = vmatpush.bf16.msra.mxu0 0
    %1489 = vmatpush.bf16.msra.mxu0 0
    %1490 = vmatpush.bf16.msra.mxu0 %v1478
    %1491 = vmatpush.bf16.msra.mxu0 %v1477
    %1492 = vmatpush.bf16.msra.mxu0 %v1476
    %1493 = vmatpush.bf16.msra.mxu0 %v1475
    %1494 = vmatmul.bf16.gmra.mxu0 %v1484
    %v1495 = vpop.f32.mrf.mxu0
    %v1496 = vadd.f32 %v1455, %v1495
    %v1497 = vpop.f32.mrf.mxu0
    %v1498 = vadd.f32 %v1455, %v1497
    %1499 = vdwg.mxu0
    %v1500 = vld [vmem:[#allocation3 + $0x1d0] sm:$0xf]
    %v1501 = vld [vmem:[#allocation3 + $0x1d8] sm:$0xf]
    %v1502 = vld [vmem:[#allocation3 + $0x1e0] sm:$0xf]
    %v1503 = vld [vmem:[#allocation3 + $0x1e8] sm:$0xf]
    %v1508 = vunpack.c.l.b16 %v1500
    %v1509 = vunpack.c.l.b16 %v1501
    %v1510 = vunpack.c.l.b16 %v1502
    %v1511 = vunpack.c.l.b16 %v1503
    %v1512 = vpack.c.b16 %v1509, %v1508
    %v1513 = vpack.c.b16 %v1511, %v1510
    %v1516 = vsel %vm77, 0, 0
    %1518 = vmatpush.bf16.msra.mxu0 0
    %1519 = vmatpush.bf16.msra.mxu0 0
    %1520 = vmatpush.bf16.msra.mxu0 0
    %1521 = vmatpush.bf16.msra.mxu0 0
    %1522 = vmatpush.bf16.msra.mxu0 0
    %1523 = vmatpush.bf16.msra.mxu0 0
    %1524 = vmatpush.bf16.msra.mxu0 %v1513
    %1525 = vmatpush.bf16.msra.mxu0 %v1512
    %1526 = vmatmul.bf16.gmra.mxu0 %v1516
    %v1527 = vpop.f32.mrf.mxu0
    %v1528 = vadd.f32 0.0, %v1527
    %v1529 = vpop.f32.mrf.mxu0
    %1530 = vdwg.mxu0
    %v1531 = vadd.f32 %v1496, %v1528
    %v1532 = vxor.u32 %v1531, 2147483648
    %v1533 = vmul.f32 %v1532, 1.442695
    %v1534 = vpow.pop %v1533
    %v1535 = vadd.f32 %v1534, 1.0
    %v1536 = vrcp.pop %v1535
    %v1537 = vmul.f32 %v1535, %v1536
    %v1538 = vsub.f32 1.0, %v1537
    %v1539 = vmul.f32 %v1536, %v1538
    %v1540 = vadd.f32 %v1536, %v1539
    %vm1541 = vweird.f32 %v1535
    %vm1542 = vweird.f32 %v1536
    %vm1543 = vmor %vm1541, %vm1542
    %v1544 = vsel %vm1543, %v1536, %v1540
    %v1545 = vand.u32 2147483647, %v1535
    %vm1546 = vcmp.eq.f32.partialorder %v1545, 8.507059e+37
    %v1547 = vand.u32 %v1535, 2147483648
    %v1548 = vor.u32 1.1754944e-38, %v1547
    %v1549 = vsel %vm1546, %v1548, %v1544
    %v1550 = vmul.f32 1.0, %v1549
    %v1551 = vtanh.pop %v1531
    %v1552 = vmul.f32 %v1550, 0.0
    %1554 = vrot.lane.b32.xlu0 %v1551, 64
    %v1555 = vpop.permute.xlu0 %1554
    %v1557 = vmul.f32 %v1550, %v1555
    %1559 = vrot.lane.b32.xlu0 %v1557, 32
    %v1560 = vpop.permute.xlu0 %1559
    %v1562 = vadd.f32 %v1552, %v1560
    %v1563 = vtanh.pop %v1562
    %1565 = vrot.lane.b32.xlu0 %v1563, 64
    %v1566 = vpop.permute.xlu0 %1565
    %v1568 = vmul.f32 %v1550, %v1566
    %v1569 = vpack.c.bf16 %v1568, %v1568
    %1571 = vrot.lane.b32.xlu0 %v1569, 32
    %v1572 = vpop.permute.xlu0 %1571
    %v1574 = vsel %vm77, %v1572, 0
    %1576 = vmatpush.bf16.msra.mxu0 0
    %1577 = vmatpush.bf16.msra.mxu0 0
    %1578 = vmatpush.bf16.msra.mxu0 0
    %1579 = vmatpush.bf16.msra.mxu0 0
    %1580 = vmatpush.bf16.msra.mxu0 0
    %1581 = vmatpush.bf16.msra.mxu0 0
    %1582 = vmatpush.bf16.msra.mxu0 %v1513
    %1583 = vmatpush.bf16.msra.mxu0 %v1512
    %1584 = vmatmul.bf16.gmra.mxu0 %v1574
    %v1585 = vpop.f32.mrf.mxu0
    %v1586 = vadd.f32 0.0, %v1585
    %v1587 = vpop.f32.mrf.mxu0
    %1588 = vdwg.mxu0
    %v1590 = vrot.slane %v1586, 6
    %v1592 = vadd.f32 %v1496, %v1590
    %v1593 = vxor.u32 %v1592, 2147483648
    %v1594 = vmul.f32 %v1593, 1.442695
    %v1595 = vpow.pop %v1594
    %v1596 = vadd.f32 %v1595, 1.0
    %v1597 = vrcp.pop %v1596
    %v1598 = vmul.f32 %v1596, %v1597
    %v1599 = vsub.f32 1.0, %v1598
    %v1600 = vmul.f32 %v1597, %v1599
    %v1601 = vadd.f32 %v1597, %v1600
    %vm1602 = vweird.f32 %v1596
    %vm1603 = vweird.f32 %v1597
    %vm1604 = vmor %vm1602, %vm1603
    %v1605 = vsel %vm1604, %v1597, %v1601
    %v1606 = vand.u32 2147483647, %v1596
    %vm1607 = vcmp.eq.f32.partialorder %v1606, 8.507059e+37
    %v1608 = vand.u32 %v1596, 2147483648
    %v1609 = vor.u32 1.1754944e-38, %v1608
    %v1610 = vsel %vm1607, %v1609, %v1605
    %v1611 = vmul.f32 1.0, %v1610
    %v1612 = vtanh.pop %v1592
    %v1614 = vrot.slane %v1562, 6
    %v1616 = vmul.f32 %v1611, %v1614
    %1618 = vrot.lane.b32.xlu0 %v1612, 64
    %v1619 = vpop.permute.xlu0 %1618
    %v1621 = vmul.f32 %v1611, %v1619
    %1623 = vrot.lane.b32.xlu0 %v1621, 32
    %v1624 = vpop.permute.xlu0 %1623
    %v1626 = vadd.f32 %v1616, %v1624
    %v1627 = vtanh.pop %v1626
    %1629 = vrot.lane.b32.xlu0 %v1627, 64
    %v1630 = vpop.permute.xlu0 %1629
    %v1632 = vmul.f32 %v1611, %v1630
    %v1633 = vpack.c.bf16 %v1632, %v1632
    %v1635 = vrot.slane %v1633, 1
    %1636 = vrot.lane.b32.xlu0 %v1635, 32
    %v1637 = vpop.permute.xlu0 %1636
    %v1639 = vsel %vm77, %v1637, 0
    %1641 = vmatpush.bf16.msra.mxu0 0
    %1642 = vmatpush.bf16.msra.mxu0 0
    %1643 = vmatpush.bf16.msra.mxu0 0
    %1644 = vmatpush.bf16.msra.mxu0 0
    %1645 = vmatpush.bf16.msra.mxu0 0
    %1646 = vmatpush.bf16.msra.mxu0 0
    %1647 = vmatpush.bf16.msra.mxu0 %v1513
    %1648 = vmatpush.bf16.msra.mxu0 %v1512
    %1649 = vmatmul.bf16.gmra.mxu0 %v1639
    %v1650 = vpop.f32.mrf.mxu0
    %v1651 = vadd.f32 0.0, %v1650
    %v1652 = vpop.f32.mrf.mxu0
    %1653 = vdwg.mxu0
    %v1655 = vrot.slane %v1651, 4
    %v1657 = vadd.f32 %v1496, %v1655
    %v1658 = vxor.u32 %v1657, 2147483648
    %v1659 = vmul.f32 %v1658, 1.442695
    %v1660 = vpow.pop %v1659
    %v1661 = vadd.f32 %v1660, 1.0
    %v1662 = vrcp.pop %v1661
    %v1663 = vmul.f32 %v1661, %v1662
    %v1664 = vsub.f32 1.0, %v1663
    %v1665 = vmul.f32 %v1662, %v1664
    %v1666 = vadd.f32 %v1662, %v1665
    %vm1667 = vweird.f32 %v1661
    %vm1668 = vweird.f32 %v1662
    %vm1669 = vmor %vm1667, %vm1668
    %v1670 = vsel %vm1669, %v1662, %v1666
    %v1671 = vand.u32 2147483647, %v1661
    %vm1672 = vcmp.eq.f32.partialorder %v1671, 8.507059e+37
    %v1673 = vand.u32 %v1661, 2147483648
    %v1674 = vor.u32 1.1754944e-38, %v1673
    %v1675 = vsel %vm1672, %v1674, %v1670
    %v1676 = vmul.f32 1.0, %v1675
    %v1677 = vtanh.pop %v1657
    %v1679 = vrot.slane %v1626, 6
    %v1681 = vmul.f32 %v1676, %v1679
    %1683 = vrot.lane.b32.xlu0 %v1677, 64
    %v1684 = vpop.permute.xlu0 %1683
    %v1686 = vmul.f32 %v1676, %v1684
    %1688 = vrot.lane.b32.xlu0 %v1686, 32
    %v1689 = vpop.permute.xlu0 %1688
    %v1691 = vadd.f32 %v1681, %v1689
    %v1692 = vtanh.pop %v1691
    %1694 = vrot.lane.b32.xlu0 %v1692, 64
    %v1695 = vpop.permute.xlu0 %1694
    %v1697 = vmul.f32 %v1676, %v1695
    %v1698 = vpack.c.bf16 %v1697, %v1697
    %v1700 = vrot.slane %v1698, 2
    %1701 = vrot.lane.b32.xlu0 %v1700, 32
    %v1702 = vpop.permute.xlu0 %1701
    %v1704 = vsel %vm77, %v1702, 0
    %1706 = vmatpush.bf16.msra.mxu0 0
    %1707 = vmatpush.bf16.msra.mxu0 0
    %1708 = vmatpush.bf16.msra.mxu0 0
    %1709 = vmatpush.bf16.msra.mxu0 0
    %1710 = vmatpush.bf16.msra.mxu0 0
    %1711 = vmatpush.bf16.msra.mxu0 0
    %1712 = vmatpush.bf16.msra.mxu0 %v1513
    %1713 = vmatpush.bf16.msra.mxu0 %v1512
    %1714 = vmatmul.bf16.gmra.mxu0 %v1704
    %v1715 = vpop.f32.mrf.mxu0
    %v1716 = vadd.f32 0.0, %v1715
    %v1717 = vpop.f32.mrf.mxu0
    %1718 = vdwg.mxu0
    %v1720 = vrot.slane %v1716, 2
    %v1722 = vadd.f32 %v1496, %v1720
    %v1723 = vxor.u32 %v1722, 2147483648
    %v1724 = vmul.f32 %v1723, 1.442695
    %v1725 = vpow.pop %v1724
    %v1726 = vadd.f32 %v1725, 1.0
    %v1727 = vrcp.pop %v1726
    %v1728 = vmul.f32 %v1726, %v1727
    %v1729 = vsub.f32 1.0, %v1728
    %v1730 = vmul.f32 %v1727, %v1729
    %v1731 = vadd.f32 %v1727, %v1730
    %vm1732 = vweird.f32 %v1726
    %vm1733 = vweird.f32 %v1727
    %vm1734 = vmor %vm1732, %vm1733
    %v1735 = vsel %vm1734, %v1727, %v1731
    %v1736 = vand.u32 2147483647, %v1726
    %vm1737 = vcmp.eq.f32.partialorder %v1736, 8.507059e+37
    %v1738 = vand.u32 %v1726, 2147483648
    %v1739 = vor.u32 1.1754944e-38, %v1738
    %v1740 = vsel %vm1737, %v1739, %v1735
    %v1741 = vmul.f32 1.0, %v1740
    %v1742 = vtanh.pop %v1722
    %v1744 = vrot.slane %v1691, 6
    %v1746 = vmul.f32 %v1741, %v1744
    %1748 = vrot.lane.b32.xlu0 %v1742, 64
    %v1749 = vpop.permute.xlu0 %1748
    %v1751 = vmul.f32 %v1741, %v1749
    %1753 = vrot.lane.b32.xlu0 %v1751, 32
    %v1754 = vpop.permute.xlu0 %1753
    %v1756 = vadd.f32 %v1746, %v1754
    %v1757 = vtanh.pop %v1756
    %1759 = vrot.lane.b32.xlu0 %v1757, 64
    %v1760 = vpop.permute.xlu0 %1759
    %v1762 = vmul.f32 %v1741, %v1760
    %v1763 = vpack.c.bf16 %v1762, %v1762
    %v1765 = vrot.slane %v1763, 3
    %1766 = vrot.lane.b32.xlu0 %v1765, 32
    %v1767 = vpop.permute.xlu0 %1766
    %v1769 = vsel %vm77, %v1767, 0
    %1771 = vmatpush.bf16.msra.mxu0 0
    %1772 = vmatpush.bf16.msra.mxu0 0
    %1773 = vmatpush.bf16.msra.mxu0 0
    %1774 = vmatpush.bf16.msra.mxu0 0
    %1775 = vmatpush.bf16.msra.mxu0 0
    %1776 = vmatpush.bf16.msra.mxu0 0
    %1777 = vmatpush.bf16.msra.mxu0 %v1513
    %1778 = vmatpush.bf16.msra.mxu0 %v1512
    %1779 = vmatmul.bf16.gmra.mxu0 %v1769
    %v1780 = vpop.f32.mrf.mxu0
    %v1781 = vadd.f32 0.0, %v1780
    %v1782 = vpop.f32.mrf.mxu0
    %1783 = vdwg.mxu0
    %v1784 = vadd.f32 %v1498, %v1781
    %v1785 = vxor.u32 %v1784, 2147483648
    %v1786 = vmul.f32 %v1785, 1.442695
    %v1787 = vpow.pop %v1786
    %v1788 = vadd.f32 %v1787, 1.0
    %v1789 = vrcp.pop %v1788
    %v1790 = vmul.f32 %v1788, %v1789
    %v1791 = vsub.f32 1.0, %v1790
    %v1792 = vmul.f32 %v1789, %v1791
    %v1793 = vadd.f32 %v1789, %v1792
    %vm1794 = vweird.f32 %v1788
    %vm1795 = vweird.f32 %v1789
    %vm1796 = vmor %vm1794, %vm1795
    %v1797 = vsel %vm1796, %v1789, %v1793
    %v1798 = vand.u32 2147483647, %v1788
    %vm1799 = vcmp.eq.f32.partialorder %v1798, 8.507059e+37
    %v1800 = vand.u32 %v1788, 2147483648
    %v1801 = vor.u32 1.1754944e-38, %v1800
    %v1802 = vsel %vm1799, %v1801, %v1797
    %v1803 = vmul.f32 1.0, %v1802
    %v1804 = vtanh.pop %v1784
    %v1806 = vrot.slane %v1756, 6
    %v1808 = vmul.f32 %v1803, %v1806
    %1810 = vrot.lane.b32.xlu0 %v1804, 64
    %v1811 = vpop.permute.xlu0 %1810
    %v1813 = vmul.f32 %v1803, %v1811
    %1815 = vrot.lane.b32.xlu0 %v1813, 32
    %v1816 = vpop.permute.xlu0 %1815
    %v1818 = vadd.f32 %v1808, %v1816
    %v1819 = vtanh.pop %v1818
    %1821 = vrot.lane.b32.xlu0 %v1819, 64
    %v1822 = vpop.permute.xlu0 %1821
    %v1824 = vmul.f32 %v1803, %v1822
    %v1825 = vpack.c.bf16 %v1824, %v1824
    %1827 = vrot.lane.b32.xlu0 %v1825, 32
    %v1828 = vpop.permute.xlu0 %1827
    %v1830 = vsel %vm77, %v1828, 0
    %1832 = vmatpush.bf16.msra.mxu0 0
    %1833 = vmatpush.bf16.msra.mxu0 0
    %1834 = vmatpush.bf16.msra.mxu0 0
    %1835 = vmatpush.bf16.msra.mxu0 0
    %1836 = vmatpush.bf16.msra.mxu0 0
    %1837 = vmatpush.bf16.msra.mxu0 0
    %1838 = vmatpush.bf16.msra.mxu0 %v1513
    %1839 = vmatpush.bf16.msra.mxu0 %v1512
    %1840 = vmatmul.bf16.gmra.mxu0 %v1830
    %v1841 = vpop.f32.mrf.mxu0
    %v1842 = vadd.f32 0.0, %v1841
    %v1843 = vpop.f32.mrf.mxu0
    %1844 = vdwg.mxu0
    %v1846 = vrot.slane %v1842, 6
    %v1848 = vadd.f32 %v1498, %v1846
    %v1849 = vxor.u32 %v1848, 2147483648
    %v1850 = vmul.f32 %v1849, 1.442695
    %v1851 = vpow.pop %v1850
    %v1852 = vadd.f32 %v1851, 1.0
    %v1853 = vrcp.pop %v1852
    %v1854 = vmul.f32 %v1852, %v1853
    %v1855 = vsub.f32 1.0, %v1854
    %v1856 = vmul.f32 %v1853, %v1855
    %v1857 = vadd.f32 %v1853, %v1856
    %vm1858 = vweird.f32 %v1852
    %vm1859 = vweird.f32 %v1853
    %vm1860 = vmor %vm1858, %vm1859
    %v1861 = vsel %vm1860, %v1853, %v1857
    %v1862 = vand.u32 2147483647, %v1852
    %vm1863 = vcmp.eq.f32.partialorder %v1862, 8.507059e+37
    %v1864 = vand.u32 %v1852, 2147483648
    %v1865 = vor.u32 1.1754944e-38, %v1864
    %v1866 = vsel %vm1863, %v1865, %v1861
    %v1867 = vmul.f32 1.0, %v1866
    %v1868 = vtanh.pop %v1848
    %v1870 = vrot.slane %v1818, 6
    %v1872 = vmul.f32 %v1867, %v1870
    %1874 = vrot.lane.b32.xlu0 %v1868, 64
    %v1875 = vpop.permute.xlu0 %1874
    %v1877 = vmul.f32 %v1867, %v1875
    %1879 = vrot.lane.b32.xlu0 %v1877, 32
    %v1880 = vpop.permute.xlu0 %1879
    %v1882 = vadd.f32 %v1872, %v1880
    %v1883 = vtanh.pop %v1882
    %1885 = vrot.lane.b32.xlu0 %v1883, 64
    %v1886 = vpop.permute.xlu0 %1885
    %v1888 = vmul.f32 %v1867, %v1886
    %v1889 = vpack.c.bf16 %v1888, %v1888
    %v1891 = vrot.slane %v1889, 1
    %1892 = vrot.lane.b32.xlu0 %v1891, 32
    %v1893 = vpop.permute.xlu0 %1892
    %v1895 = vsel %vm77, %v1893, 0
    %1897 = vmatpush.bf16.msra.mxu0 0
    %1898 = vmatpush.bf16.msra.mxu0 0
    %1899 = vmatpush.bf16.msra.mxu0 0
    %1900 = vmatpush.bf16.msra.mxu0 0
    %1901 = vmatpush.bf16.msra.mxu0 0
    %1902 = vmatpush.bf16.msra.mxu0 0
    %1903 = vmatpush.bf16.msra.mxu0 %v1513
    %1904 = vmatpush.bf16.msra.mxu0 %v1512
    %1905 = vmatmul.bf16.gmra.mxu0 %v1895
    %v1906 = vpop.f32.mrf.mxu0
    %v1907 = vadd.f32 0.0, %v1906
    %v1908 = vpop.f32.mrf.mxu0
    %1909 = vdwg.mxu0
    %v1911 = vrot.slane %v1907, 4
    %v1913 = vadd.f32 %v1498, %v1911
    %v1914 = vxor.u32 %v1913, 2147483648
    %v1915 = vmul.f32 %v1914, 1.442695
    %v1916 = vpow.pop %v1915
    %v1917 = vadd.f32 %v1916, 1.0
    %v1918 = vrcp.pop %v1917
    %v1919 = vmul.f32 %v1917, %v1918
    %v1920 = vsub.f32 1.0, %v1919
    %v1921 = vmul.f32 %v1918, %v1920
    %v1922 = vadd.f32 %v1918, %v1921
    %vm1923 = vweird.f32 %v1917
    %vm1924 = vweird.f32 %v1918
    %vm1925 = vmor %vm1923, %vm1924
    %v1926 = vsel %vm1925, %v1918, %v1922
    %v1927 = vand.u32 2147483647, %v1917
    %vm1928 = vcmp.eq.f32.partialorder %v1927, 8.507059e+37
    %v1929 = vand.u32 %v1917, 2147483648
    %v1930 = vor.u32 1.1754944e-38, %v1929
    %v1931 = vsel %vm1928, %v1930, %v1926
    %v1932 = vmul.f32 1.0, %v1931
    %v1933 = vtanh.pop %v1913
    %v1935 = vrot.slane %v1882, 6
    %v1937 = vmul.f32 %v1932, %v1935
    %1939 = vrot.lane.b32.xlu0 %v1933, 64
    %v1940 = vpop.permute.xlu0 %1939
    %v1942 = vmul.f32 %v1932, %v1940
    %1944 = vrot.lane.b32.xlu0 %v1942, 32
    %v1945 = vpop.permute.xlu0 %1944
    %v1947 = vadd.f32 %v1937, %v1945
    %v1948 = vtanh.pop %v1947
    %1950 = vrot.lane.b32.xlu0 %v1948, 64
    %v1951 = vpop.permute.xlu0 %1950
    %v1953 = vmul.f32 %v1932, %v1951
    %v1954 = vpack.c.bf16 %v1953, %v1953
    %v1956 = vrot.slane %v1954, 2
    %1957 = vrot.lane.b32.xlu0 %v1956, 32
    %v1958 = vpop.permute.xlu0 %1957
    %v1960 = vsel %vm77, %v1958, 0
    %1962 = vmatpush.bf16.msra.mxu0 0
    %1963 = vmatpush.bf16.msra.mxu0 0
    %1964 = vmatpush.bf16.msra.mxu0 0
    %1965 = vmatpush.bf16.msra.mxu0 0
    %1966 = vmatpush.bf16.msra.mxu0 0
    %1967 = vmatpush.bf16.msra.mxu0 0
    %1968 = vmatpush.bf16.msra.mxu0 %v1513
    %1969 = vmatpush.bf16.msra.mxu0 %v1512
    %1970 = vmatmul.bf16.gmra.mxu0 %v1960
    %v1971 = vpop.f32.mrf.mxu0
    %v1972 = vadd.f32 0.0, %v1971
    %v1973 = vpop.f32.mrf.mxu0
    %1974 = vdwg.mxu0
    %v1976 = vrot.slane %v1972, 2
    %v1978 = vadd.f32 %v1498, %v1976
    %v1979 = vxor.u32 %v1978, 2147483648
    %v1980 = vmul.f32 %v1979, 1.442695
    %v1981 = vpow.pop %v1980
    %v1982 = vadd.f32 %v1981, 1.0
    %v1983 = vrcp.pop %v1982
    %v1984 = vmul.f32 %v1982, %v1983
    %v1985 = vsub.f32 1.0, %v1984
    %v1986 = vmul.f32 %v1983, %v1985
    %v1987 = vadd.f32 %v1983, %v1986
    %vm1988 = vweird.f32 %v1982
    %vm1989 = vweird.f32 %v1983
    %vm1990 = vmor %vm1988, %vm1989
    %v1991 = vsel %vm1990, %v1983, %v1987
    %v1992 = vand.u32 2147483647, %v1982
    %vm1993 = vcmp.eq.f32.partialorder %v1992, 8.507059e+37
    %v1994 = vand.u32 %v1982, 2147483648
    %v1995 = vor.u32 1.1754944e-38, %v1994
    %v1996 = vsel %vm1993, %v1995, %v1991
    %v1997 = vmul.f32 1.0, %v1996
    %v1998 = vtanh.pop %v1978
    %v2000 = vrot.slane %v1947, 6
    %v2002 = vmul.f32 %v1997, %v2000
    %2004 = vrot.lane.b32.xlu0 %v1998, 64
    %v2005 = vpop.permute.xlu0 %2004
    %v2007 = vmul.f32 %v1997, %v2005
    %2009 = vrot.lane.b32.xlu0 %v2007, 32
    %v2010 = vpop.permute.xlu0 %2009
    %v2012 = vadd.f32 %v2002, %v2010
    %v2013 = vtanh.pop %v2012
    %2015 = vrot.lane.b32.xlu0 %v2013, 64
    %v2016 = vpop.permute.xlu0 %2015
    %v2018 = vmul.f32 %v1997, %v2016
    %2020 = vrot.lane.b32.xlu0 %v2018, 32
    %v2021 = vpop.permute.xlu0 %2020
    %v2024 = vrot.slane %v1446, 2
    %2025 = vrot.lane.b32.xlu0 %v2024, 64
    %v2026 = vpop.permute.xlu0 %2025
    %v2028 = vsel %vm77, %v2021, %v2026
    %vm2029 = vcmask 523270
    %v2030 = vsel %vm2029, %v2028, 0.0
    %2031 = vadd.xlane.f32.xlu0 %v2030
    %v2032 = vpop.xlane.xlu0 %2031
    %v2033 = vrcp.pop 64.0
    %v2034 = vmul.f32 64.0, %v2033
    %v2035 = vsub.f32 1.0, %v2034
    %v2036 = vmul.f32 %v2033, %v2035
    %v2037 = vadd.f32 %v2033, %v2036
    %vm2038 = vweird.f32 %v2033
    %v2039 = vsel %vm2038, %v2033, %v2037
    %v2040 = vmul.f32 %v2032, %v2039
    %v2041 = vsub.f32 %v2028, %v2040
    %v2042 = vmul.f32 %v2041, %v2041
    %v2043 = vsel %vm2029, %v2042, 0.0
    %2044 = vadd.xlane.f32.xlu0 %v2043
    %v2045 = vpop.xlane.xlu0 %2044
    %v2046 = vmul.f32 %v2045, %v2039
    %v2047 = vadd.f32 %v2046, 1e-05
    %v2048 = vrsqrt.pop %v2047
    %v2049 = vmul.f32 %v2048, %v2047
    %v2050 = vmul.f32 %v2049, %v2048
    %v2051 = vmul.f32 0.5, %v2050
    %v2052 = vsub.f32 1.5, %v2051
    %v2053 = vmul.f32 %v2048, %v2052
    %vm2054 = vweird.f32 %v2047
    %vm2055 = vweird.f32 %v2048
    %vm2056 = vmor %vm2054, %vm2055
    %v2057 = vsel %vm2056, %v2048, %v2053
    %v2058 = vmul.f32 %v2041, %v2057
    %v2059 = vld [vmem:[#allocation5 + $0x13] ss:$0 sm:$0xff]
    %v2060 = vmul.f32 %v2058, %v2059
    %v2061 = vld [vmem:[#allocation5 + $0x14] ss:$0 sm:$0xff]
    %v2062 = vadd.f32 %v2060, %v2061
    %v2063 = vmax.f32 %v2062, 0.0
    %v2064 = vld [vmem:[#allocation3 + $0x90] sm:$0xf]
    %v2065 = vld [vmem:[#allocation3 + $0x98] sm:$0xf]
    %v2066 = vld [vmem:[#allocation3 + $0xa0] sm:$0xf]
    %v2067 = vld [vmem:[#allocation3 + $0xa8] sm:$0xf]
    %v2068 = vld [vmem:[#allocation3 + $0xb0] sm:$0xf]
    %v2069 = vld [vmem:[#allocation3 + $0xb8] sm:$0xf]
    %v2070 = vld [vmem:[#allocation3 + $0xc0] sm:$0xf]
    %v2071 = vld [vmem:[#allocation3 + $0xc8] sm:$0xf]
    %v2072 = vpack.c.bf16 %v2063, %v2063
    %v2073 = vld [vmem:[#allocation5 + $0x15] ss:$0 sm:$0xff]
    %v2075 = vrot.slane %v2072, 3
    %v2084 = vunpack.c.l.b16 %v2064
    %v2085 = vunpack.c.l.b16 %v2065
    %v2086 = vunpack.c.l.b16 %v2066
    %v2087 = vunpack.c.l.b16 %v2067
    %v2088 = vunpack.c.l.b16 %v2068
    %v2089 = vunpack.c.l.b16 %v2069
    %v2090 = vunpack.c.l.b16 %v2070
    %v2091 = vunpack.c.l.b16 %v2071
    %v2092 = vpack.c.b16 %v2085, %v2084
    %v2093 = vpack.c.b16 %v2087, %v2086
    %v2094 = vpack.c.b16 %v2089, %v2088
    %v2095 = vpack.c.b16 %v2091, %v2090
    %v2101 = vsel %vm554, %v2075, 0
    %2103 = vmatpush.bf16.msra.mxu0 0
    %2104 = vmatpush.bf16.msra.mxu0 0
    %2105 = vmatpush.bf16.msra.mxu0 0
    %2106 = vmatpush.bf16.msra.mxu0 0
    %2107 = vmatpush.bf16.msra.mxu0 %v2095
    %2108 = vmatpush.bf16.msra.mxu0 %v2094
    %2109 = vmatpush.bf16.msra.mxu0 %v2093
    %2110 = vmatpush.bf16.msra.mxu0 %v2092
    %2111 = vmatmul.bf16.gmra.mxu0 %v2101
    %v2112 = vpop.f32.mrf.mxu0
    %v2113 = vadd.f32 %v2073, %v2112
    %v2114 = vpop.f32.mrf.mxu0
    %2115 = vdwg.mxu0
    %v2116 = vsel %vm638, %v2113, 0.0
    %2117 = vadd.xlane.f32.xlu0 %v2116
    %v2118 = vpop.xlane.xlu0 %2117
    %v2119 = vmul.f32 %v2118, %v90
    %v2120 = vsub.f32 %v2113, %v2119
    %v2121 = vmul.f32 %v2120, %v2120
    %v2122 = vsel %vm638, %v2121, 0.0
    %2123 = vadd.xlane.f32.xlu0 %v2122
    %v2124 = vpop.xlane.xlu0 %2123
    %v2125 = vmul.f32 %v2124, %v90
    %v2126 = vadd.f32 %v2125, 1e-05
    %v2127 = vrsqrt.pop %v2126
    %v2128 = vmul.f32 %v2127, %v2126
    %v2129 = vmul.f32 %v2128, %v2127
    %v2130 = vmul.f32 0.5, %v2129
    %v2131 = vsub.f32 1.5, %v2130
    %v2132 = vmul.f32 %v2127, %v2131
    %vm2133 = vweird.f32 %v2126
    %vm2134 = vweird.f32 %v2127
    %vm2135 = vmor %vm2133, %vm2134
    %v2136 = vsel %vm2135, %v2127, %v2132
    %v2137 = vmul.f32 %v2120, %v2136
    %v2138 = vld [vmem:[#allocation5 + $0x16] ss:$0 sm:$0xff]
    %v2139 = vmul.f32 %v2137, %v2138
    %v2140 = vld [vmem:[#allocation5 + $0x17] ss:$0 sm:$0xff]
    %v2141 = vadd.f32 %v2139, %v2140
    %v2142 = vmax.f32 %v2141, 0.0
    %v2143 = vld [vmem:[#allocation5 + $0x24] ss:$0 sm:$0xff]
    %v2144 = vmul.f32 %v2142, %v2143
    %v2145 = vsel %vm638, %v2144, 0.0
    %2146 = vadd.xlane.f32.xlu0 %v2145
    %v2147 = vpop.xlane.xlu0 %2146
    %v2148 = vld [vmem:[#allocation5 + $0x20] ss:$0 sm:$0xff]
    %v2149 = vadd.f32 %v2147, %v2148
    %vm2150 = vcmask 1024
    %2151 = vst.msk [vmem:[%s3] sm:$0x3] %vm2150, %v2149
    // Predicated region
    $region22: #{sepsis_pred.1} parent=1 // pred_check
      _
    $region23: #{sepsis_pred.1} parent=1 // pred_check_branch
      %2153 = sbr.rel (0) target = $region25
    $region24: #{sepsis_pred.1} parent=1 // pred_region
      _
    $region25: #{sepsis_pred.1} parent=1 // pred_fallthru
      _
    // Predicated region
    $region26: #{sepsis_pred.1} parent=1 // pred_check
      _
    $region27: #{sepsis_pred.1} parent=1 // pred_check_branch
      %2155 = sbr.rel (0) target = $region29
    $region28: #{sepsis_pred.1} parent=1 // pred_region
      _
    $region29: #{sepsis_pred.1} parent=1 // pred_fallthru
      _
    %2156 = vsyncpa [#allocation4], 1
    %2157 = vsyncpa [#allocation6], 1

</llo_original>
